<compile_context>
chip_gen: v7x
topology: tpu7x:2x2x1
jax: 0.10.0
libtpu: 0.0.40
codegen_flags: <defaults>
</compile_context>

<pallas_src>
import jax
import jax.numpy as jnp
from jax.experimental import pallas as pl
from jax.experimental.pallas import tpu as pltpu

HIDDEN = 128


def _resident(i):          # weights / biases: same block for every batch tile
    return (0, 0)


def _batch_tile(i):        # activations / outputs: tiled along the batch axis
    return (i, 0)


def mlp_kernel(x_ref,
               w1_ref, b1_ref,
               w2_ref, b2_ref,
               w3_ref, b3_ref,
               w4_ref, b4_ref,
               w5_ref, b5_ref,
               o_ref):
    """One batch tile of the fused 5-layer MLP."""

    def linear_relu(h_bf16, w_ref, b_ref):
        z = jnp.dot(h_bf16, w_ref[...],
                    preferred_element_type=jnp.float32) + b_ref[...]
        return jnp.maximum(z, 0.0)                       # f32

    h = linear_relu(x_ref[...], w1_ref, b1_ref)          # x already bf16
    h = linear_relu(h.astype(jnp.bfloat16), w2_ref, b2_ref)
    h = linear_relu(h.astype(jnp.bfloat16), w3_ref, b3_ref)
    h = linear_relu(h.astype(jnp.bfloat16), w4_ref, b4_ref)

    # fc5: (TB, 128) @ (128, 1) -> (TB, 1) as an elementwise multiply +
    # lane reduction (w5 is passed pre-transposed as (1, 128), f32).
    logits = jnp.sum(h * w5_ref[...], axis=-1, keepdims=True) + b5_ref[...]
    o_ref[...] = jax.nn.sigmoid(logits).astype(o_ref.dtype)


def net_forward(x, params, *, tb=256):
    """Forward pass of `Net`. x: (B, input_dim) f32. Returns (B, 1) f32."""
    B, D = x.shape
    n_tiles = pl.cdiv(B, tb)
    b_pad = n_tiles * tb
    if b_pad != B:
        x = jnp.pad(x, ((0, b_pad - B), (0, 0)))

    # MXU operands in bf16 (f32 accumulation); biases and fc5 row stay f32.
    x_bf = x.astype(jnp.bfloat16)
    w_bf = {i: params[f"w{i}"].astype(jnp.bfloat16) for i in range(1, 5)}
    w5_row = params["w5"].T            # (1, 128), f32
    b5 = params["b5"]                  # (1, 1),   f32

    args = (x_bf,
            w_bf[1], params["b1"],
            w_bf[2], params["b2"],
            w_bf[3], params["b3"],
            w_bf[4], params["b4"],
            w5_row, b5)

    in_specs = [pl.BlockSpec((tb, D), _batch_tile)]
    for a in args[1:]:                 # shapes captured eagerly; no closure bug
        in_specs.append(pl.BlockSpec(a.shape, _resident))

    out = pl.pallas_call(
        mlp_kernel,
        out_shape=jax.ShapeDtypeStruct((b_pad, 1), jnp.float32),
        grid=(n_tiles,),
        in_specs=in_specs,
        out_specs=pl.BlockSpec((tb, 1), _batch_tile),
        compiler_params=pltpu.CompilerParams(
            dimension_semantics=("parallel",)),
    )(*args)
    return out[:B]


def init_params(key, input_dim, hidden=HIDDEN):
    """Deterministic init matching the layer shapes of the PyTorch module."""
    dims = [(input_dim, hidden), (hidden, hidden), (hidden, hidden),
            (hidden, hidden), (hidden, 1)]
    params = {}
    for i, (din, dout) in enumerate(dims, start=1):
        key, kw, kb = jax.random.split(key, 3)
        bound = 1.0 / (din ** 0.5)     # mirrors nn.Linear's uniform bound
        params[f"w{i}"] = jax.random.uniform(
            kw, (din, dout), jnp.float32, minval=-bound, maxval=bound)
        params[f"b{i}"] = jax.random.uniform(
            kb, (1, dout), jnp.float32, minval=-bound, maxval=bound)
    return params


if __name__ == "__main__":
    B, INPUT_DIM = 512, 32             # 2 batch tiles of 256 rows

    key = jax.random.PRNGKey(0)
    key, kx = jax.random.split(key)
    x = jax.random.normal(kx, (B, INPUT_DIM), jnp.float32)
    params = init_params(key, INPUT_DIM)

    out = jax.block_until_ready(net_forward(x, params, tb=256))
    assert out.shape == (B, 1)

    # Reference 1: mirrors the kernel's bf16-matmul / f32-accumulate math.
    h = x
    for i in range(1, 5):
        h = jnp.maximum(
            jnp.dot(h.astype(jnp.bfloat16),
                    params[f"w{i}"].astype(jnp.bfloat16),
                    preferred_element_type=jnp.float32) + params[f"b{i}"],
            0.0)
    ref_bf = jax.nn.sigmoid(
        jnp.sum(h * params["w5"].T, axis=-1, keepdims=True) + params["b5"])
    assert jnp.allclose(out, ref_bf, atol=1e-3), "mismatch vs bf16-mirror ref"

    # Reference 2: pure-f32 semantics of the PyTorch module (looser tolerance
    # because the kernel feeds the MXU bf16 operands).
    h = x
    for i in range(1, 5):
        h = jnp.maximum(h @ params[f"w{i}"] + params[f"b{i}"], 0.0)
    ref_f32 = jax.nn.sigmoid(h @ params["w5"] + params["b5"])
    assert jnp.allclose(out, ref_f32, atol=2e-2), "mismatch vs f32 reference"

    print("KERNEL_OK")
</pallas_src>

<mosaic_0001>
module attributes {stable_mosaic.version = 11 : i64} {
  func.func @mlp_kernel(%arg0: i32, %arg1: memref<256x32xbf16, #tpu.memory_space<vmem>>, %arg2: memref<32x128xbf16, #tpu.memory_space<vmem>>, %arg3: memref<1x128xf32, #tpu.memory_space<vmem>>, %arg4: memref<128x128xbf16, #tpu.memory_space<vmem>>, %arg5: memref<1x128xf32, #tpu.memory_space<vmem>>, %arg6: memref<128x128xbf16, #tpu.memory_space<vmem>>, %arg7: memref<1x128xf32, #tpu.memory_space<vmem>>, %arg8: memref<128x128xbf16, #tpu.memory_space<vmem>>, %arg9: memref<1x128xf32, #tpu.memory_space<vmem>>, %arg10: memref<1x128xf32, #tpu.memory_space<vmem>>, %arg11: memref<1x1xf32, #tpu.memory_space<vmem>>, %arg12: memref<256x1xf32, #tpu.memory_space<vmem>>) attributes {dimension_semantics = [#tpu.dimension_semantics<parallel>], iteration_bounds = array<i64: 2>, scalar_prefetch = 0 : i64, scratch_operands = 0 : i64, tpu.core_type = #tpu.core_type<tc>, window_params = [{transform_indices = @transform_0, window_bounds = array<i64: 256, 32>}, {pipeline_mode = #tpu.pipeline_mode<synchronous>, transform_indices = @transform_1, window_bounds = array<i64: 32, 128>}, {pipeline_mode = #tpu.pipeline_mode<synchronous>, transform_indices = @transform_2, window_bounds = array<i64: 1, 128>}, {pipeline_mode = #tpu.pipeline_mode<synchronous>, transform_indices = @transform_3, window_bounds = array<i64: 128, 128>}, {pipeline_mode = #tpu.pipeline_mode<synchronous>, transform_indices = @transform_4, window_bounds = array<i64: 1, 128>}, {pipeline_mode = #tpu.pipeline_mode<synchronous>, transform_indices = @transform_5, window_bounds = array<i64: 128, 128>}, {pipeline_mode = #tpu.pipeline_mode<synchronous>, transform_indices = @transform_6, window_bounds = array<i64: 1, 128>}, {pipeline_mode = #tpu.pipeline_mode<synchronous>, transform_indices = @transform_7, window_bounds = array<i64: 128, 128>}, {pipeline_mode = #tpu.pipeline_mode<synchronous>, transform_indices = @transform_8, window_bounds = array<i64: 1, 128>}, {pipeline_mode = #tpu.pipeline_mode<synchronous>, transform_indices = @transform_9, window_bounds = array<i64: 1, 128>}, {pipeline_mode = #tpu.pipeline_mode<synchronous>, transform_indices = @transform_10, window_bounds = array<i64: 1, 1>}, {transform_indices = @transform_11, window_bounds = array<i64: 256, 1>}]} {
    %c0 = arith.constant 0 : index
    %c0_0 = arith.constant 0 : index
    %0 = vector.load %arg1[%c0, %c0_0] : memref<256x32xbf16, #tpu.memory_space<vmem>>, vector<256x32xbf16>
    %c0_1 = arith.constant 0 : index
    %c0_2 = arith.constant 0 : index
    %1 = vector.load %arg2[%c0_1, %c0_2] : memref<32x128xbf16, #tpu.memory_space<vmem>>, vector<32x128xbf16>
    %cst = arith.constant dense<0.000000e+00> : vector<256x128xf32>
    %2 = tpu.matmul %0, %1, %cst {dimension_numbers = #tpu.dot_dimension_numbers<[1], [0], [0], [1], [0, 0, 1, 1], [], []>} : vector<256x32xbf16>, vector<32x128xbf16>, vector<256x128xf32> -> vector<256x128xf32>
    %c0_3 = arith.constant 0 : index
    %c0_4 = arith.constant 0 : index
    %3 = vector.load %arg3[%c0_3, %c0_4] : memref<1x128xf32, #tpu.memory_space<vmem>>, vector<1x128xf32>
    %4 = vector.broadcast %3 : vector<1x128xf32> to vector<256x128xf32>
    %5 = arith.addf %2, %4 : vector<256x128xf32>
    %cst_5 = arith.constant 0.000000e+00 : f32
    %6 = vector.broadcast %cst_5 : f32 to vector<256x128xf32>
    %7 = arith.maximumf %5, %6 : vector<256x128xf32>
    %8 = arith.truncf %7 : vector<256x128xf32> to vector<256x128xbf16>
    %c0_6 = arith.constant 0 : index
    %c0_7 = arith.constant 0 : index
    %9 = vector.load %arg4[%c0_6, %c0_7] : memref<128x128xbf16, #tpu.memory_space<vmem>>, vector<128x128xbf16>
    %cst_8 = arith.constant dense<0.000000e+00> : vector<256x128xf32>
    %10 = tpu.matmul %8, %9, %cst_8 {dimension_numbers = #tpu.dot_dimension_numbers<[1], [0], [0], [1], [0, 0, 1, 1], [], []>} : vector<256x128xbf16>, vector<128x128xbf16>, vector<256x128xf32> -> vector<256x128xf32>
    %c0_9 = arith.constant 0 : index
    %c0_10 = arith.constant 0 : index
    %11 = vector.load %arg5[%c0_9, %c0_10] : memref<1x128xf32, #tpu.memory_space<vmem>>, vector<1x128xf32>
    %12 = vector.broadcast %11 : vector<1x128xf32> to vector<256x128xf32>
    %13 = arith.addf %10, %12 : vector<256x128xf32>
    %cst_11 = arith.constant 0.000000e+00 : f32
    %14 = vector.broadcast %cst_11 : f32 to vector<256x128xf32>
    %15 = arith.maximumf %13, %14 : vector<256x128xf32>
    %16 = arith.truncf %15 : vector<256x128xf32> to vector<256x128xbf16>
    %c0_12 = arith.constant 0 : index
    %c0_13 = arith.constant 0 : index
    %17 = vector.load %arg6[%c0_12, %c0_13] : memref<128x128xbf16, #tpu.memory_space<vmem>>, vector<128x128xbf16>
    %cst_14 = arith.constant dense<0.000000e+00> : vector<256x128xf32>
    %18 = tpu.matmul %16, %17, %cst_14 {dimension_numbers = #tpu.dot_dimension_numbers<[1], [0], [0], [1], [0, 0, 1, 1], [], []>} : vector<256x128xbf16>, vector<128x128xbf16>, vector<256x128xf32> -> vector<256x128xf32>
    %c0_15 = arith.constant 0 : index
    %c0_16 = arith.constant 0 : index
    %19 = vector.load %arg7[%c0_15, %c0_16] : memref<1x128xf32, #tpu.memory_space<vmem>>, vector<1x128xf32>
    %20 = vector.broadcast %19 : vector<1x128xf32> to vector<256x128xf32>
    %21 = arith.addf %18, %20 : vector<256x128xf32>
    %cst_17 = arith.constant 0.000000e+00 : f32
    %22 = vector.broadcast %cst_17 : f32 to vector<256x128xf32>
    %23 = arith.maximumf %21, %22 : vector<256x128xf32>
    %24 = arith.truncf %23 : vector<256x128xf32> to vector<256x128xbf16>
    %c0_18 = arith.constant 0 : index
    %c0_19 = arith.constant 0 : index
    %25 = vector.load %arg8[%c0_18, %c0_19] : memref<128x128xbf16, #tpu.memory_space<vmem>>, vector<128x128xbf16>
    %cst_20 = arith.constant dense<0.000000e+00> : vector<256x128xf32>
    %26 = tpu.matmul %24, %25, %cst_20 {dimension_numbers = #tpu.dot_dimension_numbers<[1], [0], [0], [1], [0, 0, 1, 1], [], []>} : vector<256x128xbf16>, vector<128x128xbf16>, vector<256x128xf32> -> vector<256x128xf32>
    %c0_21 = arith.constant 0 : index
    %c0_22 = arith.constant 0 : index
    %27 = vector.load %arg9[%c0_21, %c0_22] : memref<1x128xf32, #tpu.memory_space<vmem>>, vector<1x128xf32>
    %28 = vector.broadcast %27 : vector<1x128xf32> to vector<256x128xf32>
    %29 = arith.addf %26, %28 : vector<256x128xf32>
    %cst_23 = arith.constant 0.000000e+00 : f32
    %30 = vector.broadcast %cst_23 : f32 to vector<256x128xf32>
    %31 = arith.maximumf %29, %30 : vector<256x128xf32>
    %c0_24 = arith.constant 0 : index
    %c0_25 = arith.constant 0 : index
    %32 = vector.load %arg10[%c0_24, %c0_25] : memref<1x128xf32, #tpu.memory_space<vmem>>, vector<1x128xf32>
    %33 = vector.broadcast %32 : vector<1x128xf32> to vector<256x128xf32>
    %34 = arith.mulf %31, %33 : vector<256x128xf32>
    %cst_26 = arith.constant dense<0.000000e+00> : vector<256xf32>
    %35 = vector.multi_reduction <add>, %34, %cst_26 [1] : vector<256x128xf32> to vector<256xf32>
    %36 = vector.shape_cast %35 : vector<256xf32> to vector<256x1xf32>
    %c0_27 = arith.constant 0 : index
    %c0_28 = arith.constant 0 : index
    %37 = vector.load %arg11[%c0_27, %c0_28] : memref<1x1xf32, #tpu.memory_space<vmem>>, vector<1x1xf32>
    %38 = vector.broadcast %37 : vector<1x1xf32> to vector<256x1xf32>
    %39 = arith.addf %36, %38 : vector<256x1xf32>
    %40 = arith.negf %39 : vector<256x1xf32>
    %41 = math.exp %40 : vector<256x1xf32>
    %cst_29 = arith.constant 1.000000e+00 : f32
    %42 = vector.broadcast %cst_29 : f32 to vector<256x1xf32>
    %43 = arith.addf %42, %41 : vector<256x1xf32>
    %44 = arith.divf %42, %43 : vector<256x1xf32>
    %c0_30 = arith.constant 0 : index
    %c0_31 = arith.constant 0 : index
    %45 = vector.load %arg12[%c0_30, %c0_31] : memref<256x1xf32, #tpu.memory_space<vmem>>, vector<256x1xf32>
    tpu.vector_store %arg12[%c0_30, %c0_31], %44 {strides = array<i32>} : memref<256x1xf32, #tpu.memory_space<vmem>>, vector<256x1xf32>,
    return
  }
  func.func @transform_0(%arg0: i32) -> (i32, i32) {
    %c0_i32 = arith.constant 0 : i32
    %c0_i32_0 = arith.constant 0 : i32
    return %arg0, %c0_i32 : i32, i32
  }
  func.func @transform_1(%arg0: i32) -> (i32, i32) {
    %c0_i32 = arith.constant 0 : i32
    %c0_i32_0 = arith.constant 0 : i32
    %c0_i32_1 = arith.constant 0 : i32
    return %c0_i32, %c0_i32_0 : i32, i32
  }
  func.func @transform_2(%arg0: i32) -> (i32, i32) {
    %c0_i32 = arith.constant 0 : i32
    %c0_i32_0 = arith.constant 0 : i32
    %c0_i32_1 = arith.constant 0 : i32
    return %c0_i32, %c0_i32_0 : i32, i32
  }
  func.func @transform_3(%arg0: i32) -> (i32, i32) {
    %c0_i32 = arith.constant 0 : i32
    %c0_i32_0 = arith.constant 0 : i32
    %c0_i32_1 = arith.constant 0 : i32
    return %c0_i32, %c0_i32_0 : i32, i32
  }
  func.func @transform_4(%arg0: i32) -> (i32, i32) {
    %c0_i32 = arith.constant 0 : i32
    %c0_i32_0 = arith.constant 0 : i32
    %c0_i32_1 = arith.constant 0 : i32
    return %c0_i32, %c0_i32_0 : i32, i32
  }
  func.func @transform_5(%arg0: i32) -> (i32, i32) {
    %c0_i32 = arith.constant 0 : i32
    %c0_i32_0 = arith.constant 0 : i32
    %c0_i32_1 = arith.constant 0 : i32
    return %c0_i32, %c0_i32_0 : i32, i32
  }
  func.func @transform_6(%arg0: i32) -> (i32, i32) {
    %c0_i32 = arith.constant 0 : i32
    %c0_i32_0 = arith.constant 0 : i32
    %c0_i32_1 = arith.constant 0 : i32
    return %c0_i32, %c0_i32_0 : i32, i32
  }
  func.func @transform_7(%arg0: i32) -> (i32, i32) {
    %c0_i32 = arith.constant 0 : i32
    %c0_i32_0 = arith.constant 0 : i32
    %c0_i32_1 = arith.constant 0 : i32
    return %c0_i32, %c0_i32_0 : i32, i32
  }
  func.func @transform_8(%arg0: i32) -> (i32, i32) {
    %c0_i32 = arith.constant 0 : i32
    %c0_i32_0 = arith.constant 0 : i32
    %c0_i32_1 = arith.constant 0 : i32
    return %c0_i32, %c0_i32_0 : i32, i32
  }
  func.func @transform_9(%arg0: i32) -> (i32, i32) {
    %c0_i32 = arith.constant 0 : i32
    %c0_i32_0 = arith.constant 0 : i32
    %c0_i32_1 = arith.constant 0 : i32
    return %c0_i32, %c0_i32_0 : i32, i32
  }
  func.func @transform_10(%arg0: i32) -> (i32, i32) {
    %c0_i32 = arith.constant 0 : i32
    %c0_i32_0 = arith.constant 0 : i32
    %c0_i32_1 = arith.constant 0 : i32
    return %c0_i32, %c0_i32_0 : i32, i32
  }
  func.func @transform_11(%arg0: i32) -> (i32, i32) {
    %c0_i32 = arith.constant 0 : i32
    %c0_i32_0 = arith.constant 0 : i32
    return %arg0, %c0_i32 : i32, i32
  }
}

</mosaic_0001>

<llo_original>
// kernel: tpu_custom_call.1
$region0: #{tpu_custom_call.1}
  #allocation0 [shape = 'u32[]', space=smem, size = 0x4, offset = 0x4, fixed_abs, tag = 'smem constant byte address 0x4 - core index']
  #allocation1 [shape = 'u32[144,128]{1,0:T(1,128)}', space=vmem, size = 0x12000, scoped, tag = 'internal scratch']
  #allocation2 [shape = 'f32[1,1]{1,0:T(1,128)S(1)}', space=vmem, size = 0x200, scoped, tag = 'scoped memory for tpu_custom_call.1']
  %s0 = inlined_call_operand.vmem [shape: bf16[512,32], index: 0, kind: input, shape index: {}]
  %s1 = inlined_call_operand.vmem [shape: bf16[32,128], index: 1, kind: input, shape index: {}]
  %s2 = inlined_call_operand.vmem [shape: f32[1,128], index: 2, kind: input, shape index: {}]
  %s3 = inlined_call_operand.vmem [shape: bf16[128,128], index: 3, kind: input, shape index: {}]
  %s4 = inlined_call_operand.vmem [shape: f32[1,128], index: 4, kind: input, shape index: {}]
  %s5 = inlined_call_operand.vmem [shape: bf16[128,128], index: 5, kind: input, shape index: {}]
  %s6 = inlined_call_operand.vmem [shape: f32[1,128], index: 6, kind: input, shape index: {}]
  %s7 = inlined_call_operand.vmem [shape: bf16[128,128], index: 7, kind: input, shape index: {}]
  %s8 = inlined_call_operand.vmem [shape: f32[1,128], index: 8, kind: input, shape index: {}]
  %s9 = inlined_call_operand.vmem [shape: f32[1,128], index: 9, kind: input, shape index: {}]
  %s10 = inlined_call_operand.<no memory space> [shape: f32[1,1], index: 10, kind: input, shape index: {}]
  %s11 = inlined_call_operand.vmem [shape: f32[512,1], index: 11, kind: output, shape index: {}]
  %s12 = sld [smem:[#allocation0]]
  $region77: #{tpu_custom_call.1} parent=0
    _
  %s14 = ssub.s32 1, %s12
  %s15 = scalar_select 0, %s14, %s12
  %v16 = vstv %s10
  %17 = vst [vmem:[#allocation2] sm:$0x1] %v16
  loop: start=0, step=1, limit=4
  $region2: #{tpu_custom_call.1} parent=0 // loop_pre_header
    _
  $region3: #{tpu_custom_call.1} parent=0 // loop_header
    %s19 = sphi 0, %s23
    %p20 = scmp.ge.s32.totalorder %s19, 4
    %s29 = sphi 0, %s31
    %s32 = sphi 0, %s29
    %s33 = sphi 0, %s32
    %s49 = sphi 0, %s33
    %s53 = sphi 0, %s53
    %s55 = sphi 0, %s53
    %s56 = sphi 0, %s55
    %s70 = sphi 0, %s56
    %s74 = sphi 0, %s74
    %s76 = sphi 0, %s74
    %s77 = sphi 0, %s76
    %s91 = sphi 0, %s77
    %s95 = sphi 0, %s95
    %s97 = sphi 0, %s95
    %s98 = sphi 0, %s97
    %s112 = sphi 0, %s98
    %s116 = sphi 0, %s116
    %s118 = sphi 0, %s116
    %s119 = sphi 0, %s118
    %s133 = sphi 0, %s119
    %s137 = sphi 0, %s137
    %s139 = sphi 0, %s137
    %s140 = sphi 0, %s139
    %s154 = sphi 0, %s140
    %s158 = sphi 0, %s158
    %s160 = sphi 0, %s158
    %s161 = sphi 0, %s160
    %s175 = sphi 0, %s161
    %s179 = sphi 0, %s179
    %s181 = sphi 0, %s179
    %s182 = sphi 0, %s181
    %s196 = sphi 0, %s182
    %s200 = sphi 0, %s200
    %s202 = sphi 0, %s200
    %s203 = sphi 0, %s202
    %s217 = sphi 0, %s203
    %s221 = sphi 0, %s221
    %s223 = sphi 0, %s221
    %s224 = sphi 0, %s223
    %s238 = sphi 0, %s224
    %s242 = sphi 0, %s242
    %s244 = sphi 0, %s242
    %s245 = sphi 0, %s244
    %s259 = sphi 0, %s245
    %s265 = sphi 0, %s267
    %s268 = sphi 0, %s265
    %s269 = sphi 0, %s268
    %s285 = sphi 0, %s269
  $region4: #{tpu_custom_call.1} parent=0 // loop_header_branch
    %22 = sbr.rel (%p20) target = $region8
  $region5: #{tpu_custom_call.1} parent=0 // loop_body
    %s24 = ssub.s32 %s19, 1
    %s25 = ssub.s32 %s19, 2
    %s26 = sadd.s32 %s19, 1
    %s27 = ssub.s32 %s19, %s26
    %p28 = scmp.eq.s32.totalorder %s27, 0
    %s30 = sadd.s32 %s29, 1
    %s31 = scalar_select %p28, %s29, %s30
    %p34 = pneg %p28
    %p35 = scmp.eq.s32.totalorder %s19, 1
    %p36 = por %p34, %p35
    %p37 = scmp.ne.s32.totalorder %s29, %s32
    %p38 = scmp.eq.s32.totalorder %s19, 0
    %p39 = por %p37, %p38
    %p40 = scmp.ne.s32.totalorder %s29, %s32
    %p41 = scmp.eq.s32.totalorder %s24, 1
    %p42 = por %p40, %p41
    %p43 = scmp.ne.s32.totalorder %s32, %s33
    %p44 = scmp.eq.s32.totalorder %s24, 0
    %p45 = por %p43, %p44
    %p46 = scmp.ne.s32.totalorder %s32, %s33
    %p47 = scmp.eq.s32.totalorder %s25, 1
    %p48 = por %p46, %p47
    %p50 = scmp.ne.s32.totalorder %s33, %s49
    %p51 = scmp.eq.s32.totalorder %s25, 0
    %p52 = por %p50, %p51
    %s54 = sadd.s32 %s53, 1
    %p57 = scmp.eq.s32.totalorder %s19, 1
    %p58 = scmp.ne.s32.totalorder %s53, %s55
    %p59 = scmp.eq.s32.totalorder %s19, 0
    %p60 = por %p58, %p59
    %p61 = scmp.ne.s32.totalorder %s53, %s55
    %p62 = scmp.eq.s32.totalorder %s24, 1
    %p63 = por %p61, %p62
    %p64 = scmp.ne.s32.totalorder %s55, %s56
    %p65 = scmp.eq.s32.totalorder %s24, 0
    %p66 = por %p64, %p65
    %p67 = scmp.ne.s32.totalorder %s55, %s56
    %p68 = scmp.eq.s32.totalorder %s25, 1
    %p69 = por %p67, %p68
    %p71 = scmp.ne.s32.totalorder %s56, %s70
    %p72 = scmp.eq.s32.totalorder %s25, 0
    %p73 = por %p71, %p72
    %s75 = sadd.s32 %s74, 1
    %p78 = scmp.eq.s32.totalorder %s19, 1
    %p79 = scmp.ne.s32.totalorder %s74, %s76
    %p80 = scmp.eq.s32.totalorder %s19, 0
    %p81 = por %p79, %p80
    %p82 = scmp.ne.s32.totalorder %s74, %s76
    %p83 = scmp.eq.s32.totalorder %s24, 1
    %p84 = por %p82, %p83
    %p85 = scmp.ne.s32.totalorder %s76, %s77
    %p86 = scmp.eq.s32.totalorder %s24, 0
    %p87 = por %p85, %p86
    %p88 = scmp.ne.s32.totalorder %s76, %s77
    %p89 = scmp.eq.s32.totalorder %s25, 1
    %p90 = por %p88, %p89
    %p92 = scmp.ne.s32.totalorder %s77, %s91
    %p93 = scmp.eq.s32.totalorder %s25, 0
    %p94 = por %p92, %p93
    %s96 = sadd.s32 %s95, 1
    %p99 = scmp.eq.s32.totalorder %s19, 1
    %p100 = scmp.ne.s32.totalorder %s95, %s97
    %p101 = scmp.eq.s32.totalorder %s19, 0
    %p102 = por %p100, %p101
    %p103 = scmp.ne.s32.totalorder %s95, %s97
    %p104 = scmp.eq.s32.totalorder %s24, 1
    %p105 = por %p103, %p104
    %p106 = scmp.ne.s32.totalorder %s97, %s98
    %p107 = scmp.eq.s32.totalorder %s24, 0
    %p108 = por %p106, %p107
    %p109 = scmp.ne.s32.totalorder %s97, %s98
    %p110 = scmp.eq.s32.totalorder %s25, 1
    %p111 = por %p109, %p110
    %p113 = scmp.ne.s32.totalorder %s98, %s112
    %p114 = scmp.eq.s32.totalorder %s25, 0
    %p115 = por %p113, %p114
    %s117 = sadd.s32 %s116, 1
    %p120 = scmp.eq.s32.totalorder %s19, 1
    %p121 = scmp.ne.s32.totalorder %s116, %s118
    %p122 = scmp.eq.s32.totalorder %s19, 0
    %p123 = por %p121, %p122
    %p124 = scmp.ne.s32.totalorder %s116, %s118
    %p125 = scmp.eq.s32.totalorder %s24, 1
    %p126 = por %p124, %p125
    %p127 = scmp.ne.s32.totalorder %s118, %s119
    %p128 = scmp.eq.s32.totalorder %s24, 0
    %p129 = por %p127, %p128
    %p130 = scmp.ne.s32.totalorder %s118, %s119
    %p131 = scmp.eq.s32.totalorder %s25, 1
    %p132 = por %p130, %p131
    %p134 = scmp.ne.s32.totalorder %s119, %s133
    %p135 = scmp.eq.s32.totalorder %s25, 0
    %p136 = por %p134, %p135
    %s138 = sadd.s32 %s137, 1
    %p141 = scmp.eq.s32.totalorder %s19, 1
    %p142 = scmp.ne.s32.totalorder %s137, %s139
    %p143 = scmp.eq.s32.totalorder %s19, 0
    %p144 = por %p142, %p143
    %p145 = scmp.ne.s32.totalorder %s137, %s139
    %p146 = scmp.eq.s32.totalorder %s24, 1
    %p147 = por %p145, %p146
    %p148 = scmp.ne.s32.totalorder %s139, %s140
    %p149 = scmp.eq.s32.totalorder %s24, 0
    %p150 = por %p148, %p149
    %p151 = scmp.ne.s32.totalorder %s139, %s140
    %p152 = scmp.eq.s32.totalorder %s25, 1
    %p153 = por %p151, %p152
    %p155 = scmp.ne.s32.totalorder %s140, %s154
    %p156 = scmp.eq.s32.totalorder %s25, 0
    %p157 = por %p155, %p156
    %s159 = sadd.s32 %s158, 1
    %p162 = scmp.eq.s32.totalorder %s19, 1
    %p163 = scmp.ne.s32.totalorder %s158, %s160
    %p164 = scmp.eq.s32.totalorder %s19, 0
    %p165 = por %p163, %p164
    %p166 = scmp.ne.s32.totalorder %s158, %s160
    %p167 = scmp.eq.s32.totalorder %s24, 1
    %p168 = por %p166, %p167
    %p169 = scmp.ne.s32.totalorder %s160, %s161
    %p170 = scmp.eq.s32.totalorder %s24, 0
    %p171 = por %p169, %p170
    %p172 = scmp.ne.s32.totalorder %s160, %s161
    %p173 = scmp.eq.s32.totalorder %s25, 1
    %p174 = por %p172, %p173
    %p176 = scmp.ne.s32.totalorder %s161, %s175
    %p177 = scmp.eq.s32.totalorder %s25, 0
    %p178 = por %p176, %p177
    %s180 = sadd.s32 %s179, 1
    %p183 = scmp.eq.s32.totalorder %s19, 1
    %p184 = scmp.ne.s32.totalorder %s179, %s181
    %p185 = scmp.eq.s32.totalorder %s19, 0
    %p186 = por %p184, %p185
    %p187 = scmp.ne.s32.totalorder %s179, %s181
    %p188 = scmp.eq.s32.totalorder %s24, 1
    %p189 = por %p187, %p188
    %p190 = scmp.ne.s32.totalorder %s181, %s182
    %p191 = scmp.eq.s32.totalorder %s24, 0
    %p192 = por %p190, %p191
    %p193 = scmp.ne.s32.totalorder %s181, %s182
    %p194 = scmp.eq.s32.totalorder %s25, 1
    %p195 = por %p193, %p194
    %p197 = scmp.ne.s32.totalorder %s182, %s196
    %p198 = scmp.eq.s32.totalorder %s25, 0
    %p199 = por %p197, %p198
    %s201 = sadd.s32 %s200, 1
    %p204 = scmp.eq.s32.totalorder %s19, 1
    %p205 = scmp.ne.s32.totalorder %s200, %s202
    %p206 = scmp.eq.s32.totalorder %s19, 0
    %p207 = por %p205, %p206
    %p208 = scmp.ne.s32.totalorder %s200, %s202
    %p209 = scmp.eq.s32.totalorder %s24, 1
    %p210 = por %p208, %p209
    %p211 = scmp.ne.s32.totalorder %s202, %s203
    %p212 = scmp.eq.s32.totalorder %s24, 0
    %p213 = por %p211, %p212
    %p214 = scmp.ne.s32.totalorder %s202, %s203
    %p215 = scmp.eq.s32.totalorder %s25, 1
    %p216 = por %p214, %p215
    %p218 = scmp.ne.s32.totalorder %s203, %s217
    %p219 = scmp.eq.s32.totalorder %s25, 0
    %p220 = por %p218, %p219
    %s222 = sadd.s32 %s221, 1
    %p225 = scmp.eq.s32.totalorder %s19, 1
    %p226 = scmp.ne.s32.totalorder %s221, %s223
    %p227 = scmp.eq.s32.totalorder %s19, 0
    %p228 = por %p226, %p227
    %p229 = scmp.ne.s32.totalorder %s221, %s223
    %p230 = scmp.eq.s32.totalorder %s24, 1
    %p231 = por %p229, %p230
    %p232 = scmp.ne.s32.totalorder %s223, %s224
    %p233 = scmp.eq.s32.totalorder %s24, 0
    %p234 = por %p232, %p233
    %p235 = scmp.ne.s32.totalorder %s223, %s224
    %p236 = scmp.eq.s32.totalorder %s25, 1
    %p237 = por %p235, %p236
    %p239 = scmp.ne.s32.totalorder %s224, %s238
    %p240 = scmp.eq.s32.totalorder %s25, 0
    %p241 = por %p239, %p240
    %s243 = sadd.s32 %s242, 1
    %p246 = scmp.eq.s32.totalorder %s19, 1
    %p247 = scmp.ne.s32.totalorder %s242, %s244
    %p248 = scmp.eq.s32.totalorder %s19, 0
    %p249 = por %p247, %p248
    %p250 = scmp.ne.s32.totalorder %s242, %s244
    %p251 = scmp.eq.s32.totalorder %s24, 1
    %p252 = por %p250, %p251
    %p253 = scmp.ne.s32.totalorder %s244, %s245
    %p254 = scmp.eq.s32.totalorder %s24, 0
    %p255 = por %p253, %p254
    %p256 = scmp.ne.s32.totalorder %s244, %s245
    %p257 = scmp.eq.s32.totalorder %s25, 1
    %p258 = por %p256, %p257
    %p260 = scmp.ne.s32.totalorder %s245, %s259
    %p261 = scmp.eq.s32.totalorder %s25, 0
    %p262 = por %p260, %p261
    %s263 = ssub.s32 %s19, %s26
    %p264 = scmp.eq.s32.totalorder %s263, 0
    %s266 = sadd.s32 %s265, 1
    %s267 = scalar_select %p264, %s265, %s266
    %p270 = pneg %p264
    %p271 = scmp.eq.s32.totalorder %s19, 1
    %p272 = por %p270, %p271
    %p273 = scmp.ne.s32.totalorder %s265, %s268
    %p274 = scmp.eq.s32.totalorder %s19, 0
    %p275 = por %p273, %p274
    %p276 = scmp.ne.s32.totalorder %s265, %s268
    %p277 = scmp.eq.s32.totalorder %s24, 1
    %p278 = por %p276, %p277
    %p279 = scmp.ne.s32.totalorder %s268, %s269
    %p280 = scmp.eq.s32.totalorder %s24, 0
    %p281 = por %p279, %p280
    %p282 = scmp.ne.s32.totalorder %s268, %s269
    %p283 = scmp.eq.s32.totalorder %s25, 1
    %p284 = por %p282, %p283
    %p286 = scmp.ne.s32.totalorder %s269, %s285
    %p287 = scmp.eq.s32.totalorder %s25, 0
    %p288 = por %p286, %p287
    %p289 = scmp.le.s32.totalorder 1, %s19
    %p290 = scmp.lt.s32.totalorder %s19, 3
    %p291 = pnand %p289, %p290
    %p292 = pneg %p291
    // Predicated region
    $region9: #{tpu_custom_call.1} parent=5 // pred_check
      _
    $region10: #{tpu_custom_call.1} parent=5 // pred_check_branch
      %294 = sbr.rel (%p291) target = $region12
    $region11: #{tpu_custom_call.1} parent=5 // pred_region
      %s295 = ssub.s32 %s19, 1
      // Predicated region
      $region13: #{tpu_custom_call.1} parent=11 // pred_check
        %p296 = pneg %p66
      $region14: #{tpu_custom_call.1} parent=11 // pred_check_branch
        %298 = sbr.rel (%p296) target = $region16
      $region15: #{tpu_custom_call.1} parent=11 // pred_region
        _
      $region16: #{tpu_custom_call.1} parent=11 // pred_fallthru
        _
      // Predicated region
      $region17: #{tpu_custom_call.1} parent=11 // pred_check
        %p299 = pneg %p87
      $region18: #{tpu_custom_call.1} parent=11 // pred_check_branch
        %301 = sbr.rel (%p299) target = $region20
      $region19: #{tpu_custom_call.1} parent=11 // pred_region
        _
      $region20: #{tpu_custom_call.1} parent=11 // pred_fallthru
        _
      // Predicated region
      $region21: #{tpu_custom_call.1} parent=11 // pred_check
        %p302 = pneg %p108
      $region22: #{tpu_custom_call.1} parent=11 // pred_check_branch
        %304 = sbr.rel (%p302) target = $region24
      $region23: #{tpu_custom_call.1} parent=11 // pred_region
        _
      $region24: #{tpu_custom_call.1} parent=11 // pred_fallthru
        _
      // Predicated region
      $region25: #{tpu_custom_call.1} parent=11 // pred_check
        %p305 = pneg %p129
      $region26: #{tpu_custom_call.1} parent=11 // pred_check_branch
        %307 = sbr.rel (%p305) target = $region28
      $region27: #{tpu_custom_call.1} parent=11 // pred_region
        _
      $region28: #{tpu_custom_call.1} parent=11 // pred_fallthru
        _
      // Predicated region
      $region29: #{tpu_custom_call.1} parent=11 // pred_check
        %p308 = pneg %p150
      $region30: #{tpu_custom_call.1} parent=11 // pred_check_branch
        %310 = sbr.rel (%p308) target = $region32
      $region31: #{tpu_custom_call.1} parent=11 // pred_region
        _
      $region32: #{tpu_custom_call.1} parent=11 // pred_fallthru
        _
      // Predicated region
      $region33: #{tpu_custom_call.1} parent=11 // pred_check
        %p311 = pneg %p171
      $region34: #{tpu_custom_call.1} parent=11 // pred_check_branch
        %313 = sbr.rel (%p311) target = $region36
      $region35: #{tpu_custom_call.1} parent=11 // pred_region
        _
      $region36: #{tpu_custom_call.1} parent=11 // pred_fallthru
        _
      // Predicated region
      $region37: #{tpu_custom_call.1} parent=11 // pred_check
        %p314 = pneg %p192
      $region38: #{tpu_custom_call.1} parent=11 // pred_check_branch
        %316 = sbr.rel (%p314) target = $region40
      $region39: #{tpu_custom_call.1} parent=11 // pred_region
        _
      $region40: #{tpu_custom_call.1} parent=11 // pred_fallthru
        _
      // Predicated region
      $region41: #{tpu_custom_call.1} parent=11 // pred_check
        %p317 = pneg %p213
      $region42: #{tpu_custom_call.1} parent=11 // pred_check_branch
        %319 = sbr.rel (%p317) target = $region44
      $region43: #{tpu_custom_call.1} parent=11 // pred_region
        _
      $region44: #{tpu_custom_call.1} parent=11 // pred_fallthru
        _
      // Predicated region
      $region45: #{tpu_custom_call.1} parent=11 // pred_check
        %p320 = pneg %p234
      $region46: #{tpu_custom_call.1} parent=11 // pred_check_branch
        %322 = sbr.rel (%p320) target = $region48
      $region47: #{tpu_custom_call.1} parent=11 // pred_region
        _
      $region48: #{tpu_custom_call.1} parent=11 // pred_fallthru
        _
      // Predicated region
      $region49: #{tpu_custom_call.1} parent=11 // pred_check
        %p323 = pneg %p255
      $region50: #{tpu_custom_call.1} parent=11 // pred_check_branch
        %325 = sbr.rel (%p323) target = $region52
      $region51: #{tpu_custom_call.1} parent=11 // pred_region
        _
      $region52: #{tpu_custom_call.1} parent=11 // pred_fallthru
        _
    $region12: #{tpu_custom_call.1} parent=5 // pred_fallthru
      _
    %p326 = scmp.lt.s32.totalorder %s19, 2
    // Predicated region
    $region53: #{tpu_custom_call.1} parent=5 // pred_check
      %p327 = pneg %p326
    $region54: #{tpu_custom_call.1} parent=5 // pred_check_branch
      %329 = sbr.rel (%p327) target = $region56
    $region55: #{tpu_custom_call.1} parent=5 // pred_region
      // Predicated region
      $region57: #{tpu_custom_call.1} parent=55 // pred_check
        %p330 = pneg %p39
      $region58: #{tpu_custom_call.1} parent=55 // pred_check_branch
        %332 = sbr.rel (%p330) target = $region60
      $region59: #{tpu_custom_call.1} parent=55 // pred_region
        %s333 = smul.u32 32, %s19
        %p334 = scmp.lt.s32.totalorder %s333, 63
        %s335 = scalar_select %p334, %s333, 63
        %s336 = smul.addr %s335, 4
        %s337 = scalar_lea.vmem %s0, %s336
        %s338 = smul.u32 32, %s19
      $region60: #{tpu_custom_call.1} parent=55 // pred_fallthru
        _
    $region56: #{tpu_custom_call.1} parent=5 // pred_fallthru
      _
    %p339 = scmp.le.s32.totalorder 1, %s19
    %p340 = scmp.lt.s32.totalorder %s19, 3
    %p341 = pnand %p339, %p340
    %p342 = pneg %p341
    // Predicated region
    $region61: #{tpu_custom_call.1} parent=5 // pred_check
      _
    $region62: #{tpu_custom_call.1} parent=5 // pred_check_branch
      %344 = sbr.rel (%p341) target = $region64
    $region63: #{tpu_custom_call.1} parent=5 // pred_region
      %s345 = ssub.s32 %s19, 1
      %s346 = smul.u32 32, %s24
      %p347 = scmp.lt.s32.totalorder %s346, 63
      %s348 = scalar_select %p347, %s346, 63
      %s349 = smul.addr %s348, 4
      %s350 = scalar_lea.vmem %s0, %s349
      %p351 = pneg %p45
      %p352 = pneg %p42
      %p353 = pneg %p66
      %p354 = pneg %p63
      %p355 = pneg %p87
      %p356 = pneg %p84
      %p357 = pneg %p108
      %p358 = pneg %p105
      %p359 = pneg %p129
      %p360 = pneg %p126
      %p361 = pneg %p150
      %p362 = pneg %p147
      %p363 = pneg %p171
      %p364 = pneg %p168
      %p365 = pneg %p192
      %p366 = pneg %p189
      %p367 = pneg %p213
      %p368 = pneg %p210
      %p369 = pneg %p234
      %p370 = pneg %p231
      %p371 = pneg %p255
      %p372 = pneg %p252
      %p373 = pneg %p281
      %p374 = pneg %p278
      %s375 = smul.u32 32, %s24
      %p376 = scmp.lt.s32.totalorder %s375, 63
      %s377 = scalar_select %p376, %s375, 63
      %s378 = smul.addr %s377, 8
      %s379 = scalar_lea.vmem %s11, %s378
      %s380 = smul.u32 32, %s24
      %p381 = scmp.lt.s32.totalorder %s380, 63
      %s382 = scalar_select %p381, %s380, 63
      %s383 = smul.addr %s382, 4
      %s384 = scalar_lea.vmem %s0, %s383
      %s385 = smul.u32 32, %s24
      %s386 = smul.u32 32, %s24
      %p387 = scmp.lt.s32.totalorder %s386, 63
      %s388 = scalar_select %p387, %s386, 63
      %s389 = smul.addr %s388, 8
      %s390 = scalar_lea.vmem %s11, %s389
      %s391 = smul.u32 32, %s24
      %v393 = vld [vmem:[%s384] sm:$0xf]
      %v394 = vld [vmem:[%s384 + $0x4] sm:$0xf]
      %v395 = vld [vmem:[%s384 + $0x8] sm:$0xf]
      %v396 = vld [vmem:[%s384 + $0xc] sm:$0xf]
      %v397 = vld [vmem:[%s384 + $0x10] sm:$0xf]
      %v398 = vld [vmem:[%s384 + $0x14] sm:$0xf]
      %v399 = vld [vmem:[%s384 + $0x18] sm:$0xf]
      %v400 = vld [vmem:[%s384 + $0x1c] sm:$0xf]
      %v401 = vld [vmem:[%s384 + $0x20] sm:$0xf]
      %v402 = vld [vmem:[%s384 + $0x24] sm:$0xf]
      %v403 = vld [vmem:[%s384 + $0x28] sm:$0xf]
      %v404 = vld [vmem:[%s384 + $0x2c] sm:$0xf]
      %v405 = vld [vmem:[%s384 + $0x30] sm:$0xf]
      %v406 = vld [vmem:[%s384 + $0x34] sm:$0xf]
      %v407 = vld [vmem:[%s384 + $0x38] sm:$0xf]
      %v408 = vld [vmem:[%s384 + $0x3c] sm:$0xf]
      %v409 = vld [vmem:[%s384 + $0x40] sm:$0xf]
      %v410 = vld [vmem:[%s384 + $0x44] sm:$0xf]
      %v411 = vld [vmem:[%s384 + $0x48] sm:$0xf]
      %v412 = vld [vmem:[%s384 + $0x4c] sm:$0xf]
      %v413 = vld [vmem:[%s384 + $0x50] sm:$0xf]
      %v414 = vld [vmem:[%s384 + $0x54] sm:$0xf]
      %v415 = vld [vmem:[%s384 + $0x58] sm:$0xf]
      %v416 = vld [vmem:[%s384 + $0x5c] sm:$0xf]
      %v417 = vld [vmem:[%s384 + $0x60] sm:$0xf]
      %v418 = vld [vmem:[%s384 + $0x64] sm:$0xf]
      %v419 = vld [vmem:[%s384 + $0x68] sm:$0xf]
      %v420 = vld [vmem:[%s384 + $0x6c] sm:$0xf]
      %v421 = vld [vmem:[%s384 + $0x70] sm:$0xf]
      %v422 = vld [vmem:[%s384 + $0x74] sm:$0xf]
      %v423 = vld [vmem:[%s384 + $0x78] sm:$0xf]
      %v424 = vld [vmem:[%s384 + $0x7c] sm:$0xf]
      %v425 = vld [vmem:[%s1] sm:$0xf]
      %v426 = vld [vmem:[%s1 + $0x4] sm:$0xf]
      %v427 = vld [vmem:[%s1 + $0x8] sm:$0xf]
      %v428 = vld [vmem:[%s1 + $0xc] sm:$0xf]
      %v429 = vld [vmem:[%s2] sm:$0x1]
      %v431 = vlaneseq
      %v432 = vshrl.u32 %v431, 7
      %v433 = vsub.s32 0, %v432
      %v434 = vrot.slane %v429, %v433
      %v468 = vunpack.c.l.b16 %v393
      %v469 = vunpack.c.l.b16 %v394
      %v470 = vunpack.c.l.b16 %v395
      %v471 = vunpack.c.l.b16 %v396
      %v472 = vunpack.c.l.b16 %v397
      %v473 = vunpack.c.l.b16 %v398
      %v474 = vunpack.c.l.b16 %v399
      %v475 = vunpack.c.l.b16 %v400
      %v476 = vunpack.c.l.b16 %v401
      %v477 = vunpack.c.l.b16 %v402
      %v478 = vunpack.c.l.b16 %v403
      %v479 = vunpack.c.l.b16 %v404
      %v480 = vunpack.c.l.b16 %v405
      %v481 = vunpack.c.l.b16 %v406
      %v482 = vunpack.c.l.b16 %v407
      %v483 = vunpack.c.l.b16 %v408
      %v484 = vunpack.c.l.b16 %v409
      %v485 = vunpack.c.l.b16 %v410
      %v486 = vunpack.c.l.b16 %v411
      %v487 = vunpack.c.l.b16 %v412
      %v488 = vunpack.c.l.b16 %v413
      %v489 = vunpack.c.l.b16 %v414
      %v490 = vunpack.c.l.b16 %v415
      %v491 = vunpack.c.l.b16 %v416
      %v492 = vunpack.c.l.b16 %v417
      %v493 = vunpack.c.l.b16 %v418
      %v494 = vunpack.c.l.b16 %v419
      %v495 = vunpack.c.l.b16 %v420
      %v496 = vunpack.c.l.b16 %v421
      %v497 = vunpack.c.l.b16 %v422
      %v498 = vunpack.c.l.b16 %v423
      %v499 = vunpack.c.l.b16 %v424
      %v500 = vpack.c.b16 %v469, %v468
      %v501 = vpack.c.b16 %v471, %v470
      %v502 = vpack.c.b16 %v473, %v472
      %v503 = vpack.c.b16 %v475, %v474
      %v504 = vpack.c.b16 %v477, %v476
      %v505 = vpack.c.b16 %v479, %v478
      %v506 = vpack.c.b16 %v481, %v480
      %v507 = vpack.c.b16 %v483, %v482
      %v508 = vpack.c.b16 %v485, %v484
      %v509 = vpack.c.b16 %v487, %v486
      %v510 = vpack.c.b16 %v489, %v488
      %v511 = vpack.c.b16 %v491, %v490
      %v512 = vpack.c.b16 %v493, %v492
      %v513 = vpack.c.b16 %v495, %v494
      %v514 = vpack.c.b16 %v497, %v496
      %v515 = vpack.c.b16 %v499, %v498
      %v520 = vunpack.c.l.b16 %v425
      %v521 = vunpack.c.l.b16 %v426
      %v522 = vunpack.c.l.b16 %v427
      %v523 = vunpack.c.l.b16 %v428
      %v524 = vpack.c.b16 %v521, %v520
      %v525 = vpack.c.b16 %v523, %v522
      %vm528 = vcmask 261120
      %v530 = vsel %vm528, %v500, 0
      %v533 = vsel %vm528, %v501, 0
      %v536 = vsel %vm528, %v502, 0
      %v539 = vsel %vm528, %v503, 0
      %v542 = vsel %vm528, %v504, 0
      %v545 = vsel %vm528, %v505, 0
      %v548 = vsel %vm528, %v506, 0
      %v551 = vsel %vm528, %v507, 0
      %v554 = vsel %vm528, %v508, 0
      %v557 = vsel %vm528, %v509, 0
      %v560 = vsel %vm528, %v510, 0
      %v563 = vsel %vm528, %v511, 0
      %v566 = vsel %vm528, %v512, 0
      %v569 = vsel %vm528, %v513, 0
      %v572 = vsel %vm528, %v514, 0
      %v575 = vsel %vm528, %v515, 0
      %577 = vmatprep.subr.bf16.mxu0 0
      %578 = vmatpush1.bf16.msra.mxu0 %v524
      %579 = vmatprep.subr.bf16.mxu0 0
      %580 = vmatpush1.bf16.msra.mxu0 %v525
      %581 = vmatprep.subr.bf16.mxu0 0
      %582 = vmatpush1.bf16.msra.mxu0 0
      %583 = vmatprep.subr.bf16.mxu0 0
      %584 = vmatpush1.bf16.msra.mxu0 0
      %585 = vmatprep.subr.bf16.mxu0 0
      %586 = vmatpush1.bf16.msra.mxu0 0
      %587 = vmatprep.subr.bf16.mxu0 0
      %588 = vmatpush1.bf16.msra.mxu0 0
      %589 = vmatprep.subr.bf16.mxu0 0
      %590 = vmatpush1.bf16.msra.mxu0 0
      %591 = vmatprep.subr.bf16.mxu0 0
      %592 = vmatpush1.bf16.msra.mxu0 0
      %593 = vmatprep.subr.bf16.mxu0 0
      %594 = vmatpush1.bf16.msra.mxu0 0
      %595 = vmatprep.subr.bf16.mxu0 0
      %596 = vmatpush1.bf16.msra.mxu0 0
      %597 = vmatprep.subr.bf16.mxu0 0
      %598 = vmatpush1.bf16.msra.mxu0 0
      %599 = vmatprep.subr.bf16.mxu0 0
      %600 = vmatpush1.bf16.msra.mxu0 0
      %601 = vmatprep.subr.bf16.mxu0 0
      %602 = vmatpush1.bf16.msra.mxu0 0
      %603 = vmatprep.subr.bf16.mxu0 0
      %604 = vmatpush1.bf16.msra.mxu0 0
      %605 = vmatprep.subr.bf16.mxu0 0
      %606 = vmatpush1.bf16.msra.mxu0 0
      %607 = vmatprep.subr.bf16.mxu0 0
      %608 = vmatpush1.bf16.msra.mxu0 0
      %609 = vmatprep.mubr.bf16.mxu0 0
      %610 = vmatmul.mubr.bf16.gmra.mrb[0].mxu0 %v530
      %v611 = vpop.f32.mrb[0].mxu0
      %v612 = vadd.f32 %v434, %v611
      %v613 = vpop.f32.mrb[0].mxu0
      %v614 = vpop.f32.mrb[0].mxu0
      %v615 = vadd.f32 %v434, %v614
      %v616 = vpop.f32.mrb[0].mxu0
      %617 = vmatprep.mubr.bf16.mxu0 0
      %618 = vmatmul.mubr.bf16.gmra.mrb[0].mxu0 %v533
      %v619 = vpop.f32.mrb[0].mxu0
      %v620 = vadd.f32 %v434, %v619
      %v621 = vpop.f32.mrb[0].mxu0
      %v622 = vpop.f32.mrb[0].mxu0
      %v623 = vadd.f32 %v434, %v622
      %v624 = vpop.f32.mrb[0].mxu0
      %625 = vmatprep.mubr.bf16.mxu0 0
      %626 = vmatmul.mubr.bf16.gmra.mrb[0].mxu0 %v536
      %v627 = vpop.f32.mrb[0].mxu0
      %v628 = vadd.f32 %v434, %v627
      %v629 = vpop.f32.mrb[0].mxu0
      %v630 = vpop.f32.mrb[0].mxu0
      %v631 = vadd.f32 %v434, %v630
      %v632 = vpop.f32.mrb[0].mxu0
      %633 = vmatprep.mubr.bf16.mxu0 0
      %634 = vmatmul.mubr.bf16.gmra.mrb[0].mxu0 %v539
      %v635 = vpop.f32.mrb[0].mxu0
      %v636 = vadd.f32 %v434, %v635
      %v637 = vpop.f32.mrb[0].mxu0
      %v638 = vpop.f32.mrb[0].mxu0
      %v639 = vadd.f32 %v434, %v638
      %v640 = vpop.f32.mrb[0].mxu0
      %641 = vmatprep.mubr.bf16.mxu0 0
      %642 = vmatmul.mubr.bf16.gmra.mrb[0].mxu0 %v542
      %v643 = vpop.f32.mrb[0].mxu0
      %v644 = vadd.f32 %v434, %v643
      %v645 = vpop.f32.mrb[0].mxu0
      %v646 = vpop.f32.mrb[0].mxu0
      %v647 = vadd.f32 %v434, %v646
      %v648 = vpop.f32.mrb[0].mxu0
      %649 = vmatprep.mubr.bf16.mxu0 0
      %650 = vmatmul.mubr.bf16.gmra.mrb[0].mxu0 %v545
      %v651 = vpop.f32.mrb[0].mxu0
      %v652 = vadd.f32 %v434, %v651
      %v653 = vpop.f32.mrb[0].mxu0
      %v654 = vpop.f32.mrb[0].mxu0
      %v655 = vadd.f32 %v434, %v654
      %v656 = vpop.f32.mrb[0].mxu0
      %657 = vmatprep.mubr.bf16.mxu0 0
      %658 = vmatmul.mubr.bf16.gmra.mrb[0].mxu0 %v548
      %v659 = vpop.f32.mrb[0].mxu0
      %v660 = vadd.f32 %v434, %v659
      %v661 = vpop.f32.mrb[0].mxu0
      %v662 = vpop.f32.mrb[0].mxu0
      %v663 = vadd.f32 %v434, %v662
      %v664 = vpop.f32.mrb[0].mxu0
      %665 = vmatprep.mubr.bf16.mxu0 0
      %666 = vmatmul.mubr.bf16.gmra.mrb[0].mxu0 %v551
      %v667 = vpop.f32.mrb[0].mxu0
      %v668 = vadd.f32 %v434, %v667
      %v669 = vpop.f32.mrb[0].mxu0
      %v670 = vpop.f32.mrb[0].mxu0
      %v671 = vadd.f32 %v434, %v670
      %v672 = vpop.f32.mrb[0].mxu0
      %673 = vmatprep.mubr.bf16.mxu0 0
      %674 = vmatmul.mubr.bf16.gmra.mrb[0].mxu0 %v554
      %v675 = vpop.f32.mrb[0].mxu0
      %v676 = vadd.f32 %v434, %v675
      %v677 = vpop.f32.mrb[0].mxu0
      %v678 = vpop.f32.mrb[0].mxu0
      %v679 = vadd.f32 %v434, %v678
      %v680 = vpop.f32.mrb[0].mxu0
      %681 = vmatprep.mubr.bf16.mxu0 0
      %682 = vmatmul.mubr.bf16.gmra.mrb[0].mxu0 %v557
      %v683 = vpop.f32.mrb[0].mxu0
      %v684 = vadd.f32 %v434, %v683
      %v685 = vpop.f32.mrb[0].mxu0
      %v686 = vpop.f32.mrb[0].mxu0
      %v687 = vadd.f32 %v434, %v686
      %v688 = vpop.f32.mrb[0].mxu0
      %689 = vmatprep.mubr.bf16.mxu0 0
      %690 = vmatmul.mubr.bf16.gmra.mrb[0].mxu0 %v560
      %v691 = vpop.f32.mrb[0].mxu0
      %v692 = vadd.f32 %v434, %v691
      %v693 = vpop.f32.mrb[0].mxu0
      %v694 = vpop.f32.mrb[0].mxu0
      %v695 = vadd.f32 %v434, %v694
      %v696 = vpop.f32.mrb[0].mxu0
      %697 = vmatprep.mubr.bf16.mxu0 0
      %698 = vmatmul.mubr.bf16.gmra.mrb[0].mxu0 %v563
      %v699 = vpop.f32.mrb[0].mxu0
      %v700 = vadd.f32 %v434, %v699
      %v701 = vpop.f32.mrb[0].mxu0
      %v702 = vpop.f32.mrb[0].mxu0
      %v703 = vadd.f32 %v434, %v702
      %v704 = vpop.f32.mrb[0].mxu0
      %705 = vmatprep.mubr.bf16.mxu0 0
      %706 = vmatmul.mubr.bf16.gmra.mrb[0].mxu0 %v566
      %v707 = vpop.f32.mrb[0].mxu0
      %v708 = vadd.f32 %v434, %v707
      %v709 = vpop.f32.mrb[0].mxu0
      %v710 = vpop.f32.mrb[0].mxu0
      %v711 = vadd.f32 %v434, %v710
      %v712 = vpop.f32.mrb[0].mxu0
      %713 = vmatprep.mubr.bf16.mxu0 0
      %714 = vmatmul.mubr.bf16.gmra.mrb[0].mxu0 %v569
      %v715 = vpop.f32.mrb[0].mxu0
      %v716 = vadd.f32 %v434, %v715
      %v717 = vpop.f32.mrb[0].mxu0
      %v718 = vpop.f32.mrb[0].mxu0
      %v719 = vadd.f32 %v434, %v718
      %v720 = vpop.f32.mrb[0].mxu0
      %721 = vmatprep.mubr.bf16.mxu0 0
      %722 = vmatmul.mubr.bf16.gmra.mrb[0].mxu0 %v572
      %v723 = vpop.f32.mrb[0].mxu0
      %v724 = vadd.f32 %v434, %v723
      %v725 = vpop.f32.mrb[0].mxu0
      %v726 = vpop.f32.mrb[0].mxu0
      %v727 = vadd.f32 %v434, %v726
      %v728 = vpop.f32.mrb[0].mxu0
      %729 = vmatprep.mubr.bf16.mxu0 0
      %730 = vmatmul.mubr.bf16.gmra.mrb[0].mxu0 %v575
      %v731 = vpop.f32.mrb[0].mxu0
      %v732 = vadd.f32 %v434, %v731
      %v733 = vpop.f32.mrb[0].mxu0
      %v734 = vpop.f32.mrb[0].mxu0
      %v735 = vadd.f32 %v434, %v734
      %v736 = vpop.f32.mrb[0].mxu0
      %737 = vdwg.mxu0
      %v738 = vmax.f32 %v612, 0.0
      %v739 = vmax.f32 %v615, 0.0
      %v740 = vmax.f32 %v620, 0.0
      %v741 = vmax.f32 %v623, 0.0
      %v742 = vmax.f32 %v628, 0.0
      %v743 = vmax.f32 %v631, 0.0
      %v744 = vmax.f32 %v636, 0.0
      %v745 = vmax.f32 %v639, 0.0
      %v746 = vmax.f32 %v644, 0.0
      %v747 = vmax.f32 %v647, 0.0
      %v748 = vmax.f32 %v652, 0.0
      %v749 = vmax.f32 %v655, 0.0
      %v750 = vmax.f32 %v660, 0.0
      %v751 = vmax.f32 %v663, 0.0
      %v752 = vmax.f32 %v668, 0.0
      %v753 = vmax.f32 %v671, 0.0
      %v754 = vmax.f32 %v676, 0.0
      %v755 = vmax.f32 %v679, 0.0
      %v756 = vmax.f32 %v684, 0.0
      %v757 = vmax.f32 %v687, 0.0
      %v758 = vmax.f32 %v692, 0.0
      %v759 = vmax.f32 %v695, 0.0
      %v760 = vmax.f32 %v700, 0.0
      %v761 = vmax.f32 %v703, 0.0
      %v762 = vmax.f32 %v708, 0.0
      %v763 = vmax.f32 %v711, 0.0
      %v764 = vmax.f32 %v716, 0.0
      %v765 = vmax.f32 %v719, 0.0
      %v766 = vmax.f32 %v724, 0.0
      %v767 = vmax.f32 %v727, 0.0
      %v768 = vmax.f32 %v732, 0.0
      %v769 = vmax.f32 %v735, 0.0
      %v770 = vpack.c.bf16 %v739, %v738
      %v771 = vpack.c.bf16 %v741, %v740
      %v772 = vpack.c.bf16 %v743, %v742
      %v773 = vpack.c.bf16 %v745, %v744
      %v774 = vpack.c.bf16 %v747, %v746
      %v775 = vpack.c.bf16 %v749, %v748
      %v776 = vpack.c.bf16 %v751, %v750
      %v777 = vpack.c.bf16 %v753, %v752
      %v778 = vpack.c.bf16 %v755, %v754
      %v779 = vpack.c.bf16 %v757, %v756
      %v780 = vpack.c.bf16 %v759, %v758
      %v781 = vpack.c.bf16 %v761, %v760
      %v782 = vpack.c.bf16 %v763, %v762
      %v783 = vpack.c.bf16 %v765, %v764
      %v784 = vpack.c.bf16 %v767, %v766
      %v785 = vpack.c.bf16 %v769, %v768
      %v786 = vld [vmem:[%s3] sm:$0xf]
      %v787 = vld [vmem:[%s3 + $0x4] sm:$0xf]
      %v788 = vld [vmem:[%s3 + $0x8] sm:$0xf]
      %v789 = vld [vmem:[%s3 + $0xc] sm:$0xf]
      %v790 = vld [vmem:[%s3 + $0x10] sm:$0xf]
      %v791 = vld [vmem:[%s3 + $0x14] sm:$0xf]
      %v792 = vld [vmem:[%s3 + $0x18] sm:$0xf]
      %v793 = vld [vmem:[%s3 + $0x1c] sm:$0xf]
      %v794 = vld [vmem:[%s3 + $0x20] sm:$0xf]
      %v795 = vld [vmem:[%s3 + $0x24] sm:$0xf]
      %v796 = vld [vmem:[%s3 + $0x28] sm:$0xf]
      %v797 = vld [vmem:[%s3 + $0x2c] sm:$0xf]
      %v798 = vld [vmem:[%s3 + $0x30] sm:$0xf]
      %v799 = vld [vmem:[%s3 + $0x34] sm:$0xf]
      %v800 = vld [vmem:[%s3 + $0x38] sm:$0xf]
      %v801 = vld [vmem:[%s3 + $0x3c] sm:$0xf]
      %v802 = vld [vmem:[%s4] sm:$0x1]
      %v804 = vlaneseq
      %v805 = vshrl.u32 %v804, 7
      %v806 = vsub.s32 0, %v805
      %v807 = vrot.slane %v802, %v806
      %v825 = vunpack.c.l.b16 %v786
      %v826 = vunpack.c.l.b16 %v787
      %v827 = vunpack.c.l.b16 %v788
      %v828 = vunpack.c.l.b16 %v789
      %v829 = vunpack.c.l.b16 %v790
      %v830 = vunpack.c.l.b16 %v791
      %v831 = vunpack.c.l.b16 %v792
      %v832 = vunpack.c.l.b16 %v793
      %v833 = vunpack.c.l.b16 %v794
      %v834 = vunpack.c.l.b16 %v795
      %v835 = vunpack.c.l.b16 %v796
      %v836 = vunpack.c.l.b16 %v797
      %v837 = vunpack.c.l.b16 %v798
      %v838 = vunpack.c.l.b16 %v799
      %v839 = vunpack.c.l.b16 %v800
      %v840 = vunpack.c.l.b16 %v801
      %v841 = vpack.c.b16 %v826, %v825
      %v842 = vpack.c.b16 %v828, %v827
      %v843 = vpack.c.b16 %v830, %v829
      %v844 = vpack.c.b16 %v832, %v831
      %v845 = vpack.c.b16 %v834, %v833
      %v846 = vpack.c.b16 %v836, %v835
      %v847 = vpack.c.b16 %v838, %v837
      %v848 = vpack.c.b16 %v840, %v839
      %857 = vmatprep.subr.bf16.mxu0 0
      %858 = vmatpush1.bf16.msra.mxu0 %v841
      %859 = vmatprep.subr.bf16.mxu0 0
      %860 = vmatpush1.bf16.msra.mxu0 %v842
      %861 = vmatprep.subr.bf16.mxu0 0
      %862 = vmatpush1.bf16.msra.mxu0 %v843
      %863 = vmatprep.subr.bf16.mxu0 0
      %864 = vmatpush1.bf16.msra.mxu0 %v844
      %865 = vmatprep.subr.bf16.mxu0 0
      %866 = vmatpush1.bf16.msra.mxu0 %v845
      %867 = vmatprep.subr.bf16.mxu0 0
      %868 = vmatpush1.bf16.msra.mxu0 %v846
      %869 = vmatprep.subr.bf16.mxu0 0
      %870 = vmatpush1.bf16.msra.mxu0 %v847
      %871 = vmatprep.subr.bf16.mxu0 0
      %872 = vmatpush1.bf16.msra.mxu0 %v848
      %873 = vmatprep.subr.bf16.mxu0 0
      %874 = vmatpush1.bf16.msra.mxu0 0
      %875 = vmatprep.subr.bf16.mxu0 0
      %876 = vmatpush1.bf16.msra.mxu0 0
      %877 = vmatprep.subr.bf16.mxu0 0
      %878 = vmatpush1.bf16.msra.mxu0 0
      %879 = vmatprep.subr.bf16.mxu0 0
      %880 = vmatpush1.bf16.msra.mxu0 0
      %881 = vmatprep.subr.bf16.mxu0 0
      %882 = vmatpush1.bf16.msra.mxu0 0
      %883 = vmatprep.subr.bf16.mxu0 0
      %884 = vmatpush1.bf16.msra.mxu0 0
      %885 = vmatprep.subr.bf16.mxu0 0
      %886 = vmatpush1.bf16.msra.mxu0 0
      %887 = vmatprep.subr.bf16.mxu0 0
      %888 = vmatpush1.bf16.msra.mxu0 0
      %889 = vmatprep.mubr.bf16.mxu0 0
      %890 = vmatmul.mubr.bf16.gmra.mrb[0].mxu0 %v770
      %v891 = vpop.f32.mrb[0].mxu0
      %v892 = vadd.f32 %v807, %v891
      %v893 = vpop.f32.mrb[0].mxu0
      %v894 = vpop.f32.mrb[0].mxu0
      %v895 = vadd.f32 %v807, %v894
      %v896 = vpop.f32.mrb[0].mxu0
      %897 = vmatprep.mubr.bf16.mxu0 0
      %898 = vmatmul.mubr.bf16.gmra.mrb[0].mxu0 %v771
      %v899 = vpop.f32.mrb[0].mxu0
      %v900 = vadd.f32 %v807, %v899
      %v901 = vpop.f32.mrb[0].mxu0
      %v902 = vpop.f32.mrb[0].mxu0
      %v903 = vadd.f32 %v807, %v902
      %v904 = vpop.f32.mrb[0].mxu0
      %905 = vmatprep.mubr.bf16.mxu0 0
      %906 = vmatmul.mubr.bf16.gmra.mrb[0].mxu0 %v772
      %v907 = vpop.f32.mrb[0].mxu0
      %v908 = vadd.f32 %v807, %v907
      %v909 = vpop.f32.mrb[0].mxu0
      %v910 = vpop.f32.mrb[0].mxu0
      %v911 = vadd.f32 %v807, %v910
      %v912 = vpop.f32.mrb[0].mxu0
      %913 = vmatprep.mubr.bf16.mxu0 0
      %914 = vmatmul.mubr.bf16.gmra.mrb[0].mxu0 %v773
      %v915 = vpop.f32.mrb[0].mxu0
      %v916 = vadd.f32 %v807, %v915
      %v917 = vpop.f32.mrb[0].mxu0
      %v918 = vpop.f32.mrb[0].mxu0
      %v919 = vadd.f32 %v807, %v918
      %v920 = vpop.f32.mrb[0].mxu0
      %921 = vmatprep.mubr.bf16.mxu0 0
      %922 = vmatmul.mubr.bf16.gmra.mrb[0].mxu0 %v774
      %v923 = vpop.f32.mrb[0].mxu0
      %v924 = vadd.f32 %v807, %v923
      %v925 = vpop.f32.mrb[0].mxu0
      %v926 = vpop.f32.mrb[0].mxu0
      %v927 = vadd.f32 %v807, %v926
      %v928 = vpop.f32.mrb[0].mxu0
      %929 = vmatprep.mubr.bf16.mxu0 0
      %930 = vmatmul.mubr.bf16.gmra.mrb[0].mxu0 %v775
      %v931 = vpop.f32.mrb[0].mxu0
      %v932 = vadd.f32 %v807, %v931
      %v933 = vpop.f32.mrb[0].mxu0
      %v934 = vpop.f32.mrb[0].mxu0
      %v935 = vadd.f32 %v807, %v934
      %v936 = vpop.f32.mrb[0].mxu0
      %937 = vmatprep.mubr.bf16.mxu0 0
      %938 = vmatmul.mubr.bf16.gmra.mrb[0].mxu0 %v776
      %v939 = vpop.f32.mrb[0].mxu0
      %v940 = vadd.f32 %v807, %v939
      %v941 = vpop.f32.mrb[0].mxu0
      %v942 = vpop.f32.mrb[0].mxu0
      %v943 = vadd.f32 %v807, %v942
      %v944 = vpop.f32.mrb[0].mxu0
      %945 = vmatprep.mubr.bf16.mxu0 0
      %946 = vmatmul.mubr.bf16.gmra.mrb[0].mxu0 %v777
      %v947 = vpop.f32.mrb[0].mxu0
      %v948 = vadd.f32 %v807, %v947
      %v949 = vpop.f32.mrb[0].mxu0
      %v950 = vpop.f32.mrb[0].mxu0
      %v951 = vadd.f32 %v807, %v950
      %v952 = vpop.f32.mrb[0].mxu0
      %953 = vmatprep.mubr.bf16.mxu0 0
      %954 = vmatmul.mubr.bf16.gmra.mrb[0].mxu0 %v778
      %v955 = vpop.f32.mrb[0].mxu0
      %v956 = vadd.f32 %v807, %v955
      %v957 = vpop.f32.mrb[0].mxu0
      %v958 = vpop.f32.mrb[0].mxu0
      %v959 = vadd.f32 %v807, %v958
      %v960 = vpop.f32.mrb[0].mxu0
      %961 = vmatprep.mubr.bf16.mxu0 0
      %962 = vmatmul.mubr.bf16.gmra.mrb[0].mxu0 %v779
      %v963 = vpop.f32.mrb[0].mxu0
      %v964 = vadd.f32 %v807, %v963
      %v965 = vpop.f32.mrb[0].mxu0
      %v966 = vpop.f32.mrb[0].mxu0
      %v967 = vadd.f32 %v807, %v966
      %v968 = vpop.f32.mrb[0].mxu0
      %969 = vmatprep.mubr.bf16.mxu0 0
      %970 = vmatmul.mubr.bf16.gmra.mrb[0].mxu0 %v780
      %v971 = vpop.f32.mrb[0].mxu0
      %v972 = vadd.f32 %v807, %v971
      %v973 = vpop.f32.mrb[0].mxu0
      %v974 = vpop.f32.mrb[0].mxu0
      %v975 = vadd.f32 %v807, %v974
      %v976 = vpop.f32.mrb[0].mxu0
      %977 = vmatprep.mubr.bf16.mxu0 0
      %978 = vmatmul.mubr.bf16.gmra.mrb[0].mxu0 %v781
      %v979 = vpop.f32.mrb[0].mxu0
      %v980 = vadd.f32 %v807, %v979
      %v981 = vpop.f32.mrb[0].mxu0
      %v982 = vpop.f32.mrb[0].mxu0
      %v983 = vadd.f32 %v807, %v982
      %v984 = vpop.f32.mrb[0].mxu0
      %985 = vmatprep.mubr.bf16.mxu0 0
      %986 = vmatmul.mubr.bf16.gmra.mrb[0].mxu0 %v782
      %v987 = vpop.f32.mrb[0].mxu0
      %v988 = vadd.f32 %v807, %v987
      %v989 = vpop.f32.mrb[0].mxu0
      %v990 = vpop.f32.mrb[0].mxu0
      %v991 = vadd.f32 %v807, %v990
      %v992 = vpop.f32.mrb[0].mxu0
      %993 = vmatprep.mubr.bf16.mxu0 0
      %994 = vmatmul.mubr.bf16.gmra.mrb[0].mxu0 %v783
      %v995 = vpop.f32.mrb[0].mxu0
      %v996 = vadd.f32 %v807, %v995
      %v997 = vpop.f32.mrb[0].mxu0
      %v998 = vpop.f32.mrb[0].mxu0
      %v999 = vadd.f32 %v807, %v998
      %v1000 = vpop.f32.mrb[0].mxu0
      %1001 = vmatprep.mubr.bf16.mxu0 0
      %1002 = vmatmul.mubr.bf16.gmra.mrb[0].mxu0 %v784
      %v1003 = vpop.f32.mrb[0].mxu0
      %v1004 = vadd.f32 %v807, %v1003
      %v1005 = vpop.f32.mrb[0].mxu0
      %v1006 = vpop.f32.mrb[0].mxu0
      %v1007 = vadd.f32 %v807, %v1006
      %v1008 = vpop.f32.mrb[0].mxu0
      %1009 = vmatprep.mubr.bf16.mxu0 0
      %1010 = vmatmul.mubr.bf16.gmra.mrb[0].mxu0 %v785
      %v1011 = vpop.f32.mrb[0].mxu0
      %v1012 = vadd.f32 %v807, %v1011
      %v1013 = vpop.f32.mrb[0].mxu0
      %v1014 = vpop.f32.mrb[0].mxu0
      %v1015 = vadd.f32 %v807, %v1014
      %v1016 = vpop.f32.mrb[0].mxu0
      %1017 = vdwg.mxu0
      %v1018 = vmax.f32 %v892, 0.0
      %v1019 = vmax.f32 %v895, 0.0
      %v1020 = vmax.f32 %v900, 0.0
      %v1021 = vmax.f32 %v903, 0.0
      %v1022 = vmax.f32 %v908, 0.0
      %v1023 = vmax.f32 %v911, 0.0
      %v1024 = vmax.f32 %v916, 0.0
      %v1025 = vmax.f32 %v919, 0.0
      %v1026 = vmax.f32 %v924, 0.0
      %v1027 = vmax.f32 %v927, 0.0
      %v1028 = vmax.f32 %v932, 0.0
      %v1029 = vmax.f32 %v935, 0.0
      %v1030 = vmax.f32 %v940, 0.0
      %v1031 = vmax.f32 %v943, 0.0
      %v1032 = vmax.f32 %v948, 0.0
      %v1033 = vmax.f32 %v951, 0.0
      %v1034 = vmax.f32 %v956, 0.0
      %v1035 = vmax.f32 %v959, 0.0
      %v1036 = vmax.f32 %v964, 0.0
      %v1037 = vmax.f32 %v967, 0.0
      %v1038 = vmax.f32 %v972, 0.0
      %v1039 = vmax.f32 %v975, 0.0
      %v1040 = vmax.f32 %v980, 0.0
      %v1041 = vmax.f32 %v983, 0.0
      %v1042 = vmax.f32 %v988, 0.0
      %v1043 = vmax.f32 %v991, 0.0
      %v1044 = vmax.f32 %v996, 0.0
      %v1045 = vmax.f32 %v999, 0.0
      %v1046 = vmax.f32 %v1004, 0.0
      %v1047 = vmax.f32 %v1007, 0.0
      %v1048 = vmax.f32 %v1012, 0.0
      %v1049 = vmax.f32 %v1015, 0.0
      %v1050 = vpack.c.bf16 %v1019, %v1018
      %v1051 = vpack.c.bf16 %v1021, %v1020
      %v1052 = vpack.c.bf16 %v1023, %v1022
      %v1053 = vpack.c.bf16 %v1025, %v1024
      %v1054 = vpack.c.bf16 %v1027, %v1026
      %v1055 = vpack.c.bf16 %v1029, %v1028
      %v1056 = vpack.c.bf16 %v1031, %v1030
      %v1057 = vpack.c.bf16 %v1033, %v1032
      %v1058 = vpack.c.bf16 %v1035, %v1034
      %v1059 = vpack.c.bf16 %v1037, %v1036
      %v1060 = vpack.c.bf16 %v1039, %v1038
      %v1061 = vpack.c.bf16 %v1041, %v1040
      %v1062 = vpack.c.bf16 %v1043, %v1042
      %v1063 = vpack.c.bf16 %v1045, %v1044
      %v1064 = vpack.c.bf16 %v1047, %v1046
      %v1065 = vpack.c.bf16 %v1049, %v1048
      %v1066 = vld [vmem:[%s5] sm:$0xf]
      %v1067 = vld [vmem:[%s5 + $0x4] sm:$0xf]
      %v1068 = vld [vmem:[%s5 + $0x8] sm:$0xf]
      %v1069 = vld [vmem:[%s5 + $0xc] sm:$0xf]
      %v1070 = vld [vmem:[%s5 + $0x10] sm:$0xf]
      %v1071 = vld [vmem:[%s5 + $0x14] sm:$0xf]
      %v1072 = vld [vmem:[%s5 + $0x18] sm:$0xf]
      %v1073 = vld [vmem:[%s5 + $0x1c] sm:$0xf]
      %v1074 = vld [vmem:[%s5 + $0x20] sm:$0xf]
      %v1075 = vld [vmem:[%s5 + $0x24] sm:$0xf]
      %v1076 = vld [vmem:[%s5 + $0x28] sm:$0xf]
      %v1077 = vld [vmem:[%s5 + $0x2c] sm:$0xf]
      %v1078 = vld [vmem:[%s5 + $0x30] sm:$0xf]
      %v1079 = vld [vmem:[%s5 + $0x34] sm:$0xf]
      %v1080 = vld [vmem:[%s5 + $0x38] sm:$0xf]
      %v1081 = vld [vmem:[%s5 + $0x3c] sm:$0xf]
      %v1082 = vld [vmem:[%s6] sm:$0x1]
      %v1084 = vlaneseq
      %v1085 = vshrl.u32 %v1084, 7
      %v1086 = vsub.s32 0, %v1085
      %v1087 = vrot.slane %v1082, %v1086
      %v1105 = vunpack.c.l.b16 %v1066
      %v1106 = vunpack.c.l.b16 %v1067
      %v1107 = vunpack.c.l.b16 %v1068
      %v1108 = vunpack.c.l.b16 %v1069
      %v1109 = vunpack.c.l.b16 %v1070
      %v1110 = vunpack.c.l.b16 %v1071
      %v1111 = vunpack.c.l.b16 %v1072
      %v1112 = vunpack.c.l.b16 %v1073
      %v1113 = vunpack.c.l.b16 %v1074
      %v1114 = vunpack.c.l.b16 %v1075
      %v1115 = vunpack.c.l.b16 %v1076
      %v1116 = vunpack.c.l.b16 %v1077
      %v1117 = vunpack.c.l.b16 %v1078
      %v1118 = vunpack.c.l.b16 %v1079
      %v1119 = vunpack.c.l.b16 %v1080
      %v1120 = vunpack.c.l.b16 %v1081
      %v1121 = vpack.c.b16 %v1106, %v1105
      %v1122 = vpack.c.b16 %v1108, %v1107
      %v1123 = vpack.c.b16 %v1110, %v1109
      %v1124 = vpack.c.b16 %v1112, %v1111
      %v1125 = vpack.c.b16 %v1114, %v1113
      %v1126 = vpack.c.b16 %v1116, %v1115
      %v1127 = vpack.c.b16 %v1118, %v1117
      %v1128 = vpack.c.b16 %v1120, %v1119
      %1137 = vmatprep.subr.bf16.mxu0 0
      %1138 = vmatpush1.bf16.msra.mxu0 %v1121
      %1139 = vmatprep.subr.bf16.mxu0 0
      %1140 = vmatpush1.bf16.msra.mxu0 %v1122
      %1141 = vmatprep.subr.bf16.mxu0 0
      %1142 = vmatpush1.bf16.msra.mxu0 %v1123
      %1143 = vmatprep.subr.bf16.mxu0 0
      %1144 = vmatpush1.bf16.msra.mxu0 %v1124
      %1145 = vmatprep.subr.bf16.mxu0 0
      %1146 = vmatpush1.bf16.msra.mxu0 %v1125
      %1147 = vmatprep.subr.bf16.mxu0 0
      %1148 = vmatpush1.bf16.msra.mxu0 %v1126
      %1149 = vmatprep.subr.bf16.mxu0 0
      %1150 = vmatpush1.bf16.msra.mxu0 %v1127
      %1151 = vmatprep.subr.bf16.mxu0 0
      %1152 = vmatpush1.bf16.msra.mxu0 %v1128
      %1153 = vmatprep.subr.bf16.mxu0 0
      %1154 = vmatpush1.bf16.msra.mxu0 0
      %1155 = vmatprep.subr.bf16.mxu0 0
      %1156 = vmatpush1.bf16.msra.mxu0 0
      %1157 = vmatprep.subr.bf16.mxu0 0
      %1158 = vmatpush1.bf16.msra.mxu0 0
      %1159 = vmatprep.subr.bf16.mxu0 0
      %1160 = vmatpush1.bf16.msra.mxu0 0
      %1161 = vmatprep.subr.bf16.mxu0 0
      %1162 = vmatpush1.bf16.msra.mxu0 0
      %1163 = vmatprep.subr.bf16.mxu0 0
      %1164 = vmatpush1.bf16.msra.mxu0 0
      %1165 = vmatprep.subr.bf16.mxu0 0
      %1166 = vmatpush1.bf16.msra.mxu0 0
      %1167 = vmatprep.subr.bf16.mxu0 0
      %1168 = vmatpush1.bf16.msra.mxu0 0
      %1169 = vmatprep.mubr.bf16.mxu0 0
      %1170 = vmatmul.mubr.bf16.gmra.mrb[0].mxu0 %v1050
      %v1171 = vpop.f32.mrb[0].mxu0
      %v1172 = vadd.f32 %v1087, %v1171
      %v1173 = vpop.f32.mrb[0].mxu0
      %v1174 = vpop.f32.mrb[0].mxu0
      %v1175 = vadd.f32 %v1087, %v1174
      %v1176 = vpop.f32.mrb[0].mxu0
      %1177 = vmatprep.mubr.bf16.mxu0 0
      %1178 = vmatmul.mubr.bf16.gmra.mrb[0].mxu0 %v1051
      %v1179 = vpop.f32.mrb[0].mxu0
      %v1180 = vadd.f32 %v1087, %v1179
      %v1181 = vpop.f32.mrb[0].mxu0
      %v1182 = vpop.f32.mrb[0].mxu0
      %v1183 = vadd.f32 %v1087, %v1182
      %v1184 = vpop.f32.mrb[0].mxu0
      %1185 = vmatprep.mubr.bf16.mxu0 0
      %1186 = vmatmul.mubr.bf16.gmra.mrb[0].mxu0 %v1052
      %v1187 = vpop.f32.mrb[0].mxu0
      %v1188 = vadd.f32 %v1087, %v1187
      %v1189 = vpop.f32.mrb[0].mxu0
      %v1190 = vpop.f32.mrb[0].mxu0
      %v1191 = vadd.f32 %v1087, %v1190
      %v1192 = vpop.f32.mrb[0].mxu0
      %1193 = vmatprep.mubr.bf16.mxu0 0
      %1194 = vmatmul.mubr.bf16.gmra.mrb[0].mxu0 %v1053
      %v1195 = vpop.f32.mrb[0].mxu0
      %v1196 = vadd.f32 %v1087, %v1195
      %v1197 = vpop.f32.mrb[0].mxu0
      %v1198 = vpop.f32.mrb[0].mxu0
      %v1199 = vadd.f32 %v1087, %v1198
      %v1200 = vpop.f32.mrb[0].mxu0
      %1201 = vmatprep.mubr.bf16.mxu0 0
      %1202 = vmatmul.mubr.bf16.gmra.mrb[0].mxu0 %v1054
      %v1203 = vpop.f32.mrb[0].mxu0
      %v1204 = vadd.f32 %v1087, %v1203
      %v1205 = vpop.f32.mrb[0].mxu0
      %v1206 = vpop.f32.mrb[0].mxu0
      %v1207 = vadd.f32 %v1087, %v1206
      %v1208 = vpop.f32.mrb[0].mxu0
      %1209 = vmatprep.mubr.bf16.mxu0 0
      %1210 = vmatmul.mubr.bf16.gmra.mrb[0].mxu0 %v1055
      %v1211 = vpop.f32.mrb[0].mxu0
      %v1212 = vadd.f32 %v1087, %v1211
      %v1213 = vpop.f32.mrb[0].mxu0
      %v1214 = vpop.f32.mrb[0].mxu0
      %v1215 = vadd.f32 %v1087, %v1214
      %v1216 = vpop.f32.mrb[0].mxu0
      %1217 = vmatprep.mubr.bf16.mxu0 0
      %1218 = vmatmul.mubr.bf16.gmra.mrb[0].mxu0 %v1056
      %v1219 = vpop.f32.mrb[0].mxu0
      %v1220 = vadd.f32 %v1087, %v1219
      %v1221 = vpop.f32.mrb[0].mxu0
      %v1222 = vpop.f32.mrb[0].mxu0
      %v1223 = vadd.f32 %v1087, %v1222
      %v1224 = vpop.f32.mrb[0].mxu0
      %1225 = vmatprep.mubr.bf16.mxu0 0
      %1226 = vmatmul.mubr.bf16.gmra.mrb[0].mxu0 %v1057
      %v1227 = vpop.f32.mrb[0].mxu0
      %v1228 = vadd.f32 %v1087, %v1227
      %v1229 = vpop.f32.mrb[0].mxu0
      %v1230 = vpop.f32.mrb[0].mxu0
      %v1231 = vadd.f32 %v1087, %v1230
      %v1232 = vpop.f32.mrb[0].mxu0
      %1233 = vmatprep.mubr.bf16.mxu0 0
      %1234 = vmatmul.mubr.bf16.gmra.mrb[0].mxu0 %v1058
      %v1235 = vpop.f32.mrb[0].mxu0
      %v1236 = vadd.f32 %v1087, %v1235
      %v1237 = vpop.f32.mrb[0].mxu0
      %v1238 = vpop.f32.mrb[0].mxu0
      %v1239 = vadd.f32 %v1087, %v1238
      %v1240 = vpop.f32.mrb[0].mxu0
      %1241 = vmatprep.mubr.bf16.mxu0 0
      %1242 = vmatmul.mubr.bf16.gmra.mrb[0].mxu0 %v1059
      %v1243 = vpop.f32.mrb[0].mxu0
      %v1244 = vadd.f32 %v1087, %v1243
      %v1245 = vpop.f32.mrb[0].mxu0
      %v1246 = vpop.f32.mrb[0].mxu0
      %v1247 = vadd.f32 %v1087, %v1246
      %v1248 = vpop.f32.mrb[0].mxu0
      %1249 = vmatprep.mubr.bf16.mxu0 0
      %1250 = vmatmul.mubr.bf16.gmra.mrb[0].mxu0 %v1060
      %v1251 = vpop.f32.mrb[0].mxu0
      %v1252 = vadd.f32 %v1087, %v1251
      %v1253 = vpop.f32.mrb[0].mxu0
      %v1254 = vpop.f32.mrb[0].mxu0
      %v1255 = vadd.f32 %v1087, %v1254
      %v1256 = vpop.f32.mrb[0].mxu0
      %1257 = vmatprep.mubr.bf16.mxu0 0
      %1258 = vmatmul.mubr.bf16.gmra.mrb[0].mxu0 %v1061
      %v1259 = vpop.f32.mrb[0].mxu0
      %v1260 = vadd.f32 %v1087, %v1259
      %v1261 = vpop.f32.mrb[0].mxu0
      %v1262 = vpop.f32.mrb[0].mxu0
      %v1263 = vadd.f32 %v1087, %v1262
      %v1264 = vpop.f32.mrb[0].mxu0
      %1265 = vmatprep.mubr.bf16.mxu0 0
      %1266 = vmatmul.mubr.bf16.gmra.mrb[0].mxu0 %v1062
      %v1267 = vpop.f32.mrb[0].mxu0
      %v1268 = vadd.f32 %v1087, %v1267
      %v1269 = vpop.f32.mrb[0].mxu0
      %v1270 = vpop.f32.mrb[0].mxu0
      %v1271 = vadd.f32 %v1087, %v1270
      %v1272 = vpop.f32.mrb[0].mxu0
      %1273 = vmatprep.mubr.bf16.mxu0 0
      %1274 = vmatmul.mubr.bf16.gmra.mrb[0].mxu0 %v1063
      %v1275 = vpop.f32.mrb[0].mxu0
      %v1276 = vadd.f32 %v1087, %v1275
      %v1277 = vpop.f32.mrb[0].mxu0
      %v1278 = vpop.f32.mrb[0].mxu0
      %v1279 = vadd.f32 %v1087, %v1278
      %v1280 = vpop.f32.mrb[0].mxu0
      %1281 = vmatprep.mubr.bf16.mxu0 0
      %1282 = vmatmul.mubr.bf16.gmra.mrb[0].mxu0 %v1064
      %v1283 = vpop.f32.mrb[0].mxu0
      %v1284 = vadd.f32 %v1087, %v1283
      %v1285 = vpop.f32.mrb[0].mxu0
      %v1286 = vpop.f32.mrb[0].mxu0
      %v1287 = vadd.f32 %v1087, %v1286
      %v1288 = vpop.f32.mrb[0].mxu0
      %1289 = vmatprep.mubr.bf16.mxu0 0
      %1290 = vmatmul.mubr.bf16.gmra.mrb[0].mxu0 %v1065
      %v1291 = vpop.f32.mrb[0].mxu0
      %v1292 = vadd.f32 %v1087, %v1291
      %v1293 = vpop.f32.mrb[0].mxu0
      %v1294 = vpop.f32.mrb[0].mxu0
      %v1295 = vadd.f32 %v1087, %v1294
      %v1296 = vpop.f32.mrb[0].mxu0
      %1297 = vdwg.mxu0
      %v1298 = vmax.f32 %v1172, 0.0
      %v1299 = vmax.f32 %v1175, 0.0
      %v1300 = vmax.f32 %v1180, 0.0
      %v1301 = vmax.f32 %v1183, 0.0
      %v1302 = vmax.f32 %v1188, 0.0
      %v1303 = vmax.f32 %v1191, 0.0
      %v1304 = vmax.f32 %v1196, 0.0
      %v1305 = vmax.f32 %v1199, 0.0
      %v1306 = vmax.f32 %v1204, 0.0
      %v1307 = vmax.f32 %v1207, 0.0
      %v1308 = vmax.f32 %v1212, 0.0
      %v1309 = vmax.f32 %v1215, 0.0
      %v1310 = vmax.f32 %v1220, 0.0
      %v1311 = vmax.f32 %v1223, 0.0
      %v1312 = vmax.f32 %v1228, 0.0
      %v1313 = vmax.f32 %v1231, 0.0
      %v1314 = vmax.f32 %v1236, 0.0
      %v1315 = vmax.f32 %v1239, 0.0
      %v1316 = vmax.f32 %v1244, 0.0
      %v1317 = vmax.f32 %v1247, 0.0
      %v1318 = vmax.f32 %v1252, 0.0
      %v1319 = vmax.f32 %v1255, 0.0
      %v1320 = vmax.f32 %v1260, 0.0
      %v1321 = vmax.f32 %v1263, 0.0
      %v1322 = vmax.f32 %v1268, 0.0
      %v1323 = vmax.f32 %v1271, 0.0
      %v1324 = vmax.f32 %v1276, 0.0
      %v1325 = vmax.f32 %v1279, 0.0
      %v1326 = vmax.f32 %v1284, 0.0
      %v1327 = vmax.f32 %v1287, 0.0
      %v1328 = vmax.f32 %v1292, 0.0
      %v1329 = vmax.f32 %v1295, 0.0
      %v1330 = vpack.c.bf16 %v1299, %v1298
      %v1331 = vpack.c.bf16 %v1301, %v1300
      %v1332 = vpack.c.bf16 %v1303, %v1302
      %v1333 = vpack.c.bf16 %v1305, %v1304
      %v1334 = vpack.c.bf16 %v1307, %v1306
      %v1335 = vpack.c.bf16 %v1309, %v1308
      %v1336 = vpack.c.bf16 %v1311, %v1310
      %v1337 = vpack.c.bf16 %v1313, %v1312
      %v1338 = vpack.c.bf16 %v1315, %v1314
      %v1339 = vpack.c.bf16 %v1317, %v1316
      %v1340 = vpack.c.bf16 %v1319, %v1318
      %v1341 = vpack.c.bf16 %v1321, %v1320
      %v1342 = vpack.c.bf16 %v1323, %v1322
      %v1343 = vpack.c.bf16 %v1325, %v1324
      %v1344 = vpack.c.bf16 %v1327, %v1326
      %v1345 = vpack.c.bf16 %v1329, %v1328
      %v1346 = vld [vmem:[%s7] sm:$0xf]
      %v1347 = vld [vmem:[%s7 + $0x4] sm:$0xf]
      %v1348 = vld [vmem:[%s7 + $0x8] sm:$0xf]
      %v1349 = vld [vmem:[%s7 + $0xc] sm:$0xf]
      %v1350 = vld [vmem:[%s7 + $0x10] sm:$0xf]
      %v1351 = vld [vmem:[%s7 + $0x14] sm:$0xf]
      %v1352 = vld [vmem:[%s7 + $0x18] sm:$0xf]
      %v1353 = vld [vmem:[%s7 + $0x1c] sm:$0xf]
      %v1354 = vld [vmem:[%s7 + $0x20] sm:$0xf]
      %v1355 = vld [vmem:[%s7 + $0x24] sm:$0xf]
      %v1356 = vld [vmem:[%s7 + $0x28] sm:$0xf]
      %v1357 = vld [vmem:[%s7 + $0x2c] sm:$0xf]
      %v1358 = vld [vmem:[%s7 + $0x30] sm:$0xf]
      %v1359 = vld [vmem:[%s7 + $0x34] sm:$0xf]
      %v1360 = vld [vmem:[%s7 + $0x38] sm:$0xf]
      %v1361 = vld [vmem:[%s7 + $0x3c] sm:$0xf]
      %v1362 = vld [vmem:[%s8] sm:$0x1]
      %v1364 = vlaneseq
      %v1365 = vshrl.u32 %v1364, 7
      %v1366 = vsub.s32 0, %v1365
      %v1367 = vrot.slane %v1362, %v1366
      %v1385 = vunpack.c.l.b16 %v1346
      %v1386 = vunpack.c.l.b16 %v1347
      %v1387 = vunpack.c.l.b16 %v1348
      %v1388 = vunpack.c.l.b16 %v1349
      %v1389 = vunpack.c.l.b16 %v1350
      %v1390 = vunpack.c.l.b16 %v1351
      %v1391 = vunpack.c.l.b16 %v1352
      %v1392 = vunpack.c.l.b16 %v1353
      %v1393 = vunpack.c.l.b16 %v1354
      %v1394 = vunpack.c.l.b16 %v1355
      %v1395 = vunpack.c.l.b16 %v1356
      %v1396 = vunpack.c.l.b16 %v1357
      %v1397 = vunpack.c.l.b16 %v1358
      %v1398 = vunpack.c.l.b16 %v1359
      %v1399 = vunpack.c.l.b16 %v1360
      %v1400 = vunpack.c.l.b16 %v1361
      %v1401 = vpack.c.b16 %v1386, %v1385
      %v1402 = vpack.c.b16 %v1388, %v1387
      %v1403 = vpack.c.b16 %v1390, %v1389
      %v1404 = vpack.c.b16 %v1392, %v1391
      %v1405 = vpack.c.b16 %v1394, %v1393
      %v1406 = vpack.c.b16 %v1396, %v1395
      %v1407 = vpack.c.b16 %v1398, %v1397
      %v1408 = vpack.c.b16 %v1400, %v1399
      %1417 = vmatprep.subr.bf16.mxu0 0
      %1418 = vmatpush1.bf16.msra.mxu0 %v1401
      %1419 = vmatprep.subr.bf16.mxu0 0
      %1420 = vmatpush1.bf16.msra.mxu0 %v1402
      %1421 = vmatprep.subr.bf16.mxu0 0
      %1422 = vmatpush1.bf16.msra.mxu0 %v1403
      %1423 = vmatprep.subr.bf16.mxu0 0
      %1424 = vmatpush1.bf16.msra.mxu0 %v1404
      %1425 = vmatprep.subr.bf16.mxu0 0
      %1426 = vmatpush1.bf16.msra.mxu0 %v1405
      %1427 = vmatprep.subr.bf16.mxu0 0
      %1428 = vmatpush1.bf16.msra.mxu0 %v1406
      %1429 = vmatprep.subr.bf16.mxu0 0
      %1430 = vmatpush1.bf16.msra.mxu0 %v1407
      %1431 = vmatprep.subr.bf16.mxu0 0
      %1432 = vmatpush1.bf16.msra.mxu0 %v1408
      %1433 = vmatprep.subr.bf16.mxu0 0
      %1434 = vmatpush1.bf16.msra.mxu0 0
      %1435 = vmatprep.subr.bf16.mxu0 0
      %1436 = vmatpush1.bf16.msra.mxu0 0
      %1437 = vmatprep.subr.bf16.mxu0 0
      %1438 = vmatpush1.bf16.msra.mxu0 0
      %1439 = vmatprep.subr.bf16.mxu0 0
      %1440 = vmatpush1.bf16.msra.mxu0 0
      %1441 = vmatprep.subr.bf16.mxu0 0
      %1442 = vmatpush1.bf16.msra.mxu0 0
      %1443 = vmatprep.subr.bf16.mxu0 0
      %1444 = vmatpush1.bf16.msra.mxu0 0
      %1445 = vmatprep.subr.bf16.mxu0 0
      %1446 = vmatpush1.bf16.msra.mxu0 0
      %1447 = vmatprep.subr.bf16.mxu0 0
      %1448 = vmatpush1.bf16.msra.mxu0 0
      %1449 = vmatprep.mubr.bf16.mxu0 0
      %1450 = vmatmul.mubr.bf16.gmra.mrb[0].mxu0 %v1330
      %v1451 = vpop.f32.mrb[0].mxu0
      %v1452 = vadd.f32 %v1367, %v1451
      %v1453 = vpop.f32.mrb[0].mxu0
      %v1454 = vpop.f32.mrb[0].mxu0
      %v1455 = vadd.f32 %v1367, %v1454
      %v1456 = vpop.f32.mrb[0].mxu0
      %1457 = vmatprep.mubr.bf16.mxu0 0
      %1458 = vmatmul.mubr.bf16.gmra.mrb[0].mxu0 %v1331
      %v1459 = vpop.f32.mrb[0].mxu0
      %v1460 = vadd.f32 %v1367, %v1459
      %v1461 = vpop.f32.mrb[0].mxu0
      %v1462 = vpop.f32.mrb[0].mxu0
      %v1463 = vadd.f32 %v1367, %v1462
      %v1464 = vpop.f32.mrb[0].mxu0
      %1465 = vmatprep.mubr.bf16.mxu0 0
      %1466 = vmatmul.mubr.bf16.gmra.mrb[0].mxu0 %v1332
      %v1467 = vpop.f32.mrb[0].mxu0
      %v1468 = vadd.f32 %v1367, %v1467
      %v1469 = vpop.f32.mrb[0].mxu0
      %v1470 = vpop.f32.mrb[0].mxu0
      %v1471 = vadd.f32 %v1367, %v1470
      %v1472 = vpop.f32.mrb[0].mxu0
      %1473 = vmatprep.mubr.bf16.mxu0 0
      %1474 = vmatmul.mubr.bf16.gmra.mrb[0].mxu0 %v1333
      %v1475 = vpop.f32.mrb[0].mxu0
      %v1476 = vadd.f32 %v1367, %v1475
      %v1477 = vpop.f32.mrb[0].mxu0
      %v1478 = vpop.f32.mrb[0].mxu0
      %v1479 = vadd.f32 %v1367, %v1478
      %v1480 = vpop.f32.mrb[0].mxu0
      %1481 = vmatprep.mubr.bf16.mxu0 0
      %1482 = vmatmul.mubr.bf16.gmra.mrb[0].mxu0 %v1334
      %v1483 = vpop.f32.mrb[0].mxu0
      %v1484 = vadd.f32 %v1367, %v1483
      %v1485 = vpop.f32.mrb[0].mxu0
      %v1486 = vpop.f32.mrb[0].mxu0
      %v1487 = vadd.f32 %v1367, %v1486
      %v1488 = vpop.f32.mrb[0].mxu0
      %1489 = vmatprep.mubr.bf16.mxu0 0
      %1490 = vmatmul.mubr.bf16.gmra.mrb[0].mxu0 %v1335
      %v1491 = vpop.f32.mrb[0].mxu0
      %v1492 = vadd.f32 %v1367, %v1491
      %v1493 = vpop.f32.mrb[0].mxu0
      %v1494 = vpop.f32.mrb[0].mxu0
      %v1495 = vadd.f32 %v1367, %v1494
      %v1496 = vpop.f32.mrb[0].mxu0
      %1497 = vmatprep.mubr.bf16.mxu0 0
      %1498 = vmatmul.mubr.bf16.gmra.mrb[0].mxu0 %v1336
      %v1499 = vpop.f32.mrb[0].mxu0
      %v1500 = vadd.f32 %v1367, %v1499
      %v1501 = vpop.f32.mrb[0].mxu0
      %v1502 = vpop.f32.mrb[0].mxu0
      %v1503 = vadd.f32 %v1367, %v1502
      %v1504 = vpop.f32.mrb[0].mxu0
      %1505 = vmatprep.mubr.bf16.mxu0 0
      %1506 = vmatmul.mubr.bf16.gmra.mrb[0].mxu0 %v1337
      %v1507 = vpop.f32.mrb[0].mxu0
      %v1508 = vadd.f32 %v1367, %v1507
      %v1509 = vpop.f32.mrb[0].mxu0
      %v1510 = vpop.f32.mrb[0].mxu0
      %v1511 = vadd.f32 %v1367, %v1510
      %v1512 = vpop.f32.mrb[0].mxu0
      %1513 = vmatprep.mubr.bf16.mxu0 0
      %1514 = vmatmul.mubr.bf16.gmra.mrb[0].mxu0 %v1338
      %v1515 = vpop.f32.mrb[0].mxu0
      %v1516 = vadd.f32 %v1367, %v1515
      %v1517 = vpop.f32.mrb[0].mxu0
      %v1518 = vpop.f32.mrb[0].mxu0
      %v1519 = vadd.f32 %v1367, %v1518
      %v1520 = vpop.f32.mrb[0].mxu0
      %1521 = vmatprep.mubr.bf16.mxu0 0
      %1522 = vmatmul.mubr.bf16.gmra.mrb[0].mxu0 %v1339
      %v1523 = vpop.f32.mrb[0].mxu0
      %v1524 = vadd.f32 %v1367, %v1523
      %v1525 = vpop.f32.mrb[0].mxu0
      %v1526 = vpop.f32.mrb[0].mxu0
      %v1527 = vadd.f32 %v1367, %v1526
      %v1528 = vpop.f32.mrb[0].mxu0
      %1529 = vmatprep.mubr.bf16.mxu0 0
      %1530 = vmatmul.mubr.bf16.gmra.mrb[0].mxu0 %v1340
      %v1531 = vpop.f32.mrb[0].mxu0
      %v1532 = vadd.f32 %v1367, %v1531
      %v1533 = vpop.f32.mrb[0].mxu0
      %v1534 = vpop.f32.mrb[0].mxu0
      %v1535 = vadd.f32 %v1367, %v1534
      %v1536 = vpop.f32.mrb[0].mxu0
      %1537 = vmatprep.mubr.bf16.mxu0 0
      %1538 = vmatmul.mubr.bf16.gmra.mrb[0].mxu0 %v1341
      %v1539 = vpop.f32.mrb[0].mxu0
      %v1540 = vadd.f32 %v1367, %v1539
      %v1541 = vpop.f32.mrb[0].mxu0
      %v1542 = vpop.f32.mrb[0].mxu0
      %v1543 = vadd.f32 %v1367, %v1542
      %v1544 = vpop.f32.mrb[0].mxu0
      %1545 = vmatprep.mubr.bf16.mxu0 0
      %1546 = vmatmul.mubr.bf16.gmra.mrb[0].mxu0 %v1342
      %v1547 = vpop.f32.mrb[0].mxu0
      %v1548 = vadd.f32 %v1367, %v1547
      %v1549 = vpop.f32.mrb[0].mxu0
      %v1550 = vpop.f32.mrb[0].mxu0
      %v1551 = vadd.f32 %v1367, %v1550
      %v1552 = vpop.f32.mrb[0].mxu0
      %1553 = vmatprep.mubr.bf16.mxu0 0
      %1554 = vmatmul.mubr.bf16.gmra.mrb[0].mxu0 %v1343
      %v1555 = vpop.f32.mrb[0].mxu0
      %v1556 = vadd.f32 %v1367, %v1555
      %v1557 = vpop.f32.mrb[0].mxu0
      %v1558 = vpop.f32.mrb[0].mxu0
      %v1559 = vadd.f32 %v1367, %v1558
      %v1560 = vpop.f32.mrb[0].mxu0
      %1561 = vmatprep.mubr.bf16.mxu0 0
      %1562 = vmatmul.mubr.bf16.gmra.mrb[0].mxu0 %v1344
      %v1563 = vpop.f32.mrb[0].mxu0
      %v1564 = vadd.f32 %v1367, %v1563
      %v1565 = vpop.f32.mrb[0].mxu0
      %v1566 = vpop.f32.mrb[0].mxu0
      %v1567 = vadd.f32 %v1367, %v1566
      %v1568 = vpop.f32.mrb[0].mxu0
      %1569 = vmatprep.mubr.bf16.mxu0 0
      %1570 = vmatmul.mubr.bf16.gmra.mrb[0].mxu0 %v1345
      %v1571 = vpop.f32.mrb[0].mxu0
      %v1572 = vadd.f32 %v1367, %v1571
      %v1573 = vpop.f32.mrb[0].mxu0
      %v1574 = vpop.f32.mrb[0].mxu0
      %v1575 = vadd.f32 %v1367, %v1574
      %v1576 = vpop.f32.mrb[0].mxu0
      %1577 = vdwg.mxu0
      %v1578 = vmax.f32 %v1452, 0.0
      %v1579 = vmax.f32 %v1455, 0.0
      %v1580 = vmax.f32 %v1460, 0.0
      %v1581 = vmax.f32 %v1463, 0.0
      %v1582 = vmax.f32 %v1468, 0.0
      %v1583 = vmax.f32 %v1471, 0.0
      %v1584 = vmax.f32 %v1476, 0.0
      %v1585 = vmax.f32 %v1479, 0.0
      %v1586 = vmax.f32 %v1484, 0.0
      %v1587 = vmax.f32 %v1487, 0.0
      %v1588 = vmax.f32 %v1492, 0.0
      %v1589 = vmax.f32 %v1495, 0.0
      %v1590 = vmax.f32 %v1500, 0.0
      %v1591 = vmax.f32 %v1503, 0.0
      %v1592 = vmax.f32 %v1508, 0.0
      %v1593 = vmax.f32 %v1511, 0.0
      %v1594 = vmax.f32 %v1516, 0.0
      %v1595 = vmax.f32 %v1519, 0.0
      %v1596 = vmax.f32 %v1524, 0.0
      %v1597 = vmax.f32 %v1527, 0.0
      %v1598 = vmax.f32 %v1532, 0.0
      %v1599 = vmax.f32 %v1535, 0.0
      %v1600 = vmax.f32 %v1540, 0.0
      %v1601 = vmax.f32 %v1543, 0.0
      %v1602 = vmax.f32 %v1548, 0.0
      %v1603 = vmax.f32 %v1551, 0.0
      %v1604 = vmax.f32 %v1556, 0.0
      %v1605 = vmax.f32 %v1559, 0.0
      %v1606 = vmax.f32 %v1564, 0.0
      %v1607 = vmax.f32 %v1567, 0.0
      %v1608 = vmax.f32 %v1572, 0.0
      %v1609 = vmax.f32 %v1575, 0.0
      %v1610 = vld [vmem:[%s9] sm:$0x1]
      %v1612 = vlaneseq
      %v1613 = vshrl.u32 %v1612, 7
      %v1614 = vsub.s32 0, %v1613
      %v1615 = vrot.slane %v1610, %v1614
      %v1617 = vmul.f32 %v1578, %v1615
      %v1618 = vmul.f32 %v1579, %v1615
      %v1619 = vmul.f32 %v1580, %v1615
      %v1620 = vmul.f32 %v1581, %v1615
      %v1621 = vmul.f32 %v1582, %v1615
      %v1622 = vmul.f32 %v1583, %v1615
      %v1623 = vmul.f32 %v1584, %v1615
      %v1624 = vmul.f32 %v1585, %v1615
      %v1625 = vmul.f32 %v1586, %v1615
      %v1626 = vmul.f32 %v1587, %v1615
      %v1627 = vmul.f32 %v1588, %v1615
      %v1628 = vmul.f32 %v1589, %v1615
      %v1629 = vmul.f32 %v1590, %v1615
      %v1630 = vmul.f32 %v1591, %v1615
      %v1631 = vmul.f32 %v1592, %v1615
      %v1632 = vmul.f32 %v1593, %v1615
      %v1633 = vmul.f32 %v1594, %v1615
      %v1634 = vmul.f32 %v1595, %v1615
      %v1635 = vmul.f32 %v1596, %v1615
      %v1636 = vmul.f32 %v1597, %v1615
      %v1637 = vmul.f32 %v1598, %v1615
      %v1638 = vmul.f32 %v1599, %v1615
      %v1639 = vmul.f32 %v1600, %v1615
      %v1640 = vmul.f32 %v1601, %v1615
      %v1641 = vmul.f32 %v1602, %v1615
      %v1642 = vmul.f32 %v1603, %v1615
      %v1643 = vmul.f32 %v1604, %v1615
      %v1644 = vmul.f32 %v1605, %v1615
      %v1645 = vmul.f32 %v1606, %v1615
      %v1646 = vmul.f32 %v1607, %v1615
      %v1647 = vmul.f32 %v1608, %v1615
      %v1648 = vmul.f32 %v1609, %v1615
      %1649 = vadd.xlane.f32.xlu0 %v1617
      %v1650 = vpop.xlane.xlu0 %1649
      %1651 = vadd.xlane.f32.xlu0 %v1618
      %v1652 = vpop.xlane.xlu0 %1651
      %1653 = vadd.xlane.f32.xlu0 %v1619
      %v1654 = vpop.xlane.xlu0 %1653
      %1655 = vadd.xlane.f32.xlu0 %v1620
      %v1656 = vpop.xlane.xlu0 %1655
      %1657 = vadd.xlane.f32.xlu0 %v1621
      %v1658 = vpop.xlane.xlu0 %1657
      %1659 = vadd.xlane.f32.xlu0 %v1622
      %v1660 = vpop.xlane.xlu0 %1659
      %1661 = vadd.xlane.f32.xlu0 %v1623
      %v1662 = vpop.xlane.xlu0 %1661
      %1663 = vadd.xlane.f32.xlu0 %v1624
      %v1664 = vpop.xlane.xlu0 %1663
      %1665 = vadd.xlane.f32.xlu0 %v1625
      %v1666 = vpop.xlane.xlu0 %1665
      %1667 = vadd.xlane.f32.xlu0 %v1626
      %v1668 = vpop.xlane.xlu0 %1667
      %1669 = vadd.xlane.f32.xlu0 %v1627
      %v1670 = vpop.xlane.xlu0 %1669
      %1671 = vadd.xlane.f32.xlu0 %v1628
      %v1672 = vpop.xlane.xlu0 %1671
      %1673 = vadd.xlane.f32.xlu0 %v1629
      %v1674 = vpop.xlane.xlu0 %1673
      %1675 = vadd.xlane.f32.xlu0 %v1630
      %v1676 = vpop.xlane.xlu0 %1675
      %1677 = vadd.xlane.f32.xlu0 %v1631
      %v1678 = vpop.xlane.xlu0 %1677
      %1679 = vadd.xlane.f32.xlu0 %v1632
      %v1680 = vpop.xlane.xlu0 %1679
      %1681 = vadd.xlane.f32.xlu0 %v1633
      %v1682 = vpop.xlane.xlu0 %1681
      %1683 = vadd.xlane.f32.xlu0 %v1634
      %v1684 = vpop.xlane.xlu0 %1683
      %1685 = vadd.xlane.f32.xlu0 %v1635
      %v1686 = vpop.xlane.xlu0 %1685
      %1687 = vadd.xlane.f32.xlu0 %v1636
      %v1688 = vpop.xlane.xlu0 %1687
      %1689 = vadd.xlane.f32.xlu0 %v1637
      %v1690 = vpop.xlane.xlu0 %1689
      %1691 = vadd.xlane.f32.xlu0 %v1638
      %v1692 = vpop.xlane.xlu0 %1691
      %1693 = vadd.xlane.f32.xlu0 %v1639
      %v1694 = vpop.xlane.xlu0 %1693
      %1695 = vadd.xlane.f32.xlu0 %v1640
      %v1696 = vpop.xlane.xlu0 %1695
      %1697 = vadd.xlane.f32.xlu0 %v1641
      %v1698 = vpop.xlane.xlu0 %1697
      %1699 = vadd.xlane.f32.xlu0 %v1642
      %v1700 = vpop.xlane.xlu0 %1699
      %1701 = vadd.xlane.f32.xlu0 %v1643
      %v1702 = vpop.xlane.xlu0 %1701
      %1703 = vadd.xlane.f32.xlu0 %v1644
      %v1704 = vpop.xlane.xlu0 %1703
      %1705 = vadd.xlane.f32.xlu0 %v1645
      %v1706 = vpop.xlane.xlu0 %1705
      %1707 = vadd.xlane.f32.xlu0 %v1646
      %v1708 = vpop.xlane.xlu0 %1707
      %1709 = vadd.xlane.f32.xlu0 %v1647
      %v1710 = vpop.xlane.xlu0 %1709
      %1711 = vadd.xlane.f32.xlu0 %v1648
      %v1712 = vpop.xlane.xlu0 %1711
      %v1713 = vld [vmem:[#allocation2] sm:$0x1]
      %v1715 = vlaneseq
      %v1716 = vshrl.u32 %v1715, 7
      %v1717 = vsub.s32 0, %v1716
      %v1718 = vrot.slane %v1713, %v1717
      %v1720 = vadd.f32 %v1650, %v1718
      %v1721 = vadd.f32 %v1652, %v1718
      %v1722 = vadd.f32 %v1654, %v1718
      %v1723 = vadd.f32 %v1656, %v1718
      %v1724 = vadd.f32 %v1658, %v1718
      %v1725 = vadd.f32 %v1660, %v1718
      %v1726 = vadd.f32 %v1662, %v1718
      %v1727 = vadd.f32 %v1664, %v1718
      %v1728 = vadd.f32 %v1666, %v1718
      %v1729 = vadd.f32 %v1668, %v1718
      %v1730 = vadd.f32 %v1670, %v1718
      %v1731 = vadd.f32 %v1672, %v1718
      %v1732 = vadd.f32 %v1674, %v1718
      %v1733 = vadd.f32 %v1676, %v1718
      %v1734 = vadd.f32 %v1678, %v1718
      %v1735 = vadd.f32 %v1680, %v1718
      %v1736 = vadd.f32 %v1682, %v1718
      %v1737 = vadd.f32 %v1684, %v1718
      %v1738 = vadd.f32 %v1686, %v1718
      %v1739 = vadd.f32 %v1688, %v1718
      %v1740 = vadd.f32 %v1690, %v1718
      %v1741 = vadd.f32 %v1692, %v1718
      %v1742 = vadd.f32 %v1694, %v1718
      %v1743 = vadd.f32 %v1696, %v1718
      %v1744 = vadd.f32 %v1698, %v1718
      %v1745 = vadd.f32 %v1700, %v1718
      %v1746 = vadd.f32 %v1702, %v1718
      %v1747 = vadd.f32 %v1704, %v1718
      %v1748 = vadd.f32 %v1706, %v1718
      %v1749 = vadd.f32 %v1708, %v1718
      %v1750 = vadd.f32 %v1710, %v1718
      %v1751 = vadd.f32 %v1712, %v1718
      %v1752 = vxor.u32 %v1720, 2147483648
      %v1753 = vxor.u32 %v1721, 2147483648
      %v1754 = vxor.u32 %v1722, 2147483648
      %v1755 = vxor.u32 %v1723, 2147483648
      %v1756 = vxor.u32 %v1724, 2147483648
      %v1757 = vxor.u32 %v1725, 2147483648
      %v1758 = vxor.u32 %v1726, 2147483648
      %v1759 = vxor.u32 %v1727, 2147483648
      %v1760 = vxor.u32 %v1728, 2147483648
      %v1761 = vxor.u32 %v1729, 2147483648
      %v1762 = vxor.u32 %v1730, 2147483648
      %v1763 = vxor.u32 %v1731, 2147483648
      %v1764 = vxor.u32 %v1732, 2147483648
      %v1765 = vxor.u32 %v1733, 2147483648
      %v1766 = vxor.u32 %v1734, 2147483648
      %v1767 = vxor.u32 %v1735, 2147483648
      %v1768 = vxor.u32 %v1736, 2147483648
      %v1769 = vxor.u32 %v1737, 2147483648
      %v1770 = vxor.u32 %v1738, 2147483648
      %v1771 = vxor.u32 %v1739, 2147483648
      %v1772 = vxor.u32 %v1740, 2147483648
      %v1773 = vxor.u32 %v1741, 2147483648
      %v1774 = vxor.u32 %v1742, 2147483648
      %v1775 = vxor.u32 %v1743, 2147483648
      %v1776 = vxor.u32 %v1744, 2147483648
      %v1777 = vxor.u32 %v1745, 2147483648
      %v1778 = vxor.u32 %v1746, 2147483648
      %v1779 = vxor.u32 %v1747, 2147483648
      %v1780 = vxor.u32 %v1748, 2147483648
      %v1781 = vxor.u32 %v1749, 2147483648
      %v1782 = vxor.u32 %v1750, 2147483648
      %v1783 = vxor.u32 %v1751, 2147483648
      %v1784 = vmul.f32 %v1752, 1.442695
      %v1785 = vpow.pop %v1784
      %v1786 = vmul.f32 %v1753, 1.442695
      %v1787 = vpow.pop %v1786
      %v1788 = vmul.f32 %v1754, 1.442695
      %v1789 = vpow.pop %v1788
      %v1790 = vmul.f32 %v1755, 1.442695
      %v1791 = vpow.pop %v1790
      %v1792 = vmul.f32 %v1756, 1.442695
      %v1793 = vpow.pop %v1792
      %v1794 = vmul.f32 %v1757, 1.442695
      %v1795 = vpow.pop %v1794
      %v1796 = vmul.f32 %v1758, 1.442695
      %v1797 = vpow.pop %v1796
      %v1798 = vmul.f32 %v1759, 1.442695
      %v1799 = vpow.pop %v1798
      %v1800 = vmul.f32 %v1760, 1.442695
      %v1801 = vpow.pop %v1800
      %v1802 = vmul.f32 %v1761, 1.442695
      %v1803 = vpow.pop %v1802
      %v1804 = vmul.f32 %v1762, 1.442695
      %v1805 = vpow.pop %v1804
      %v1806 = vmul.f32 %v1763, 1.442695
      %v1807 = vpow.pop %v1806
      %v1808 = vmul.f32 %v1764, 1.442695
      %v1809 = vpow.pop %v1808
      %v1810 = vmul.f32 %v1765, 1.442695
      %v1811 = vpow.pop %v1810
      %v1812 = vmul.f32 %v1766, 1.442695
      %v1813 = vpow.pop %v1812
      %v1814 = vmul.f32 %v1767, 1.442695
      %v1815 = vpow.pop %v1814
      %v1816 = vmul.f32 %v1768, 1.442695
      %v1817 = vpow.pop %v1816
      %v1818 = vmul.f32 %v1769, 1.442695
      %v1819 = vpow.pop %v1818
      %v1820 = vmul.f32 %v1770, 1.442695
      %v1821 = vpow.pop %v1820
      %v1822 = vmul.f32 %v1771, 1.442695
      %v1823 = vpow.pop %v1822
      %v1824 = vmul.f32 %v1772, 1.442695
      %v1825 = vpow.pop %v1824
      %v1826 = vmul.f32 %v1773, 1.442695
      %v1827 = vpow.pop %v1826
      %v1828 = vmul.f32 %v1774, 1.442695
      %v1829 = vpow.pop %v1828
      %v1830 = vmul.f32 %v1775, 1.442695
      %v1831 = vpow.pop %v1830
      %v1832 = vmul.f32 %v1776, 1.442695
      %v1833 = vpow.pop %v1832
      %v1834 = vmul.f32 %v1777, 1.442695
      %v1835 = vpow.pop %v1834
      %v1836 = vmul.f32 %v1778, 1.442695
      %v1837 = vpow.pop %v1836
      %v1838 = vmul.f32 %v1779, 1.442695
      %v1839 = vpow.pop %v1838
      %v1840 = vmul.f32 %v1780, 1.442695
      %v1841 = vpow.pop %v1840
      %v1842 = vmul.f32 %v1781, 1.442695
      %v1843 = vpow.pop %v1842
      %v1844 = vmul.f32 %v1782, 1.442695
      %v1845 = vpow.pop %v1844
      %v1846 = vmul.f32 %v1783, 1.442695
      %v1847 = vpow.pop %v1846
      %v1848 = vadd.f32 %v1785, 1.0
      %v1849 = vadd.f32 %v1787, 1.0
      %v1850 = vadd.f32 %v1789, 1.0
      %v1851 = vadd.f32 %v1791, 1.0
      %v1852 = vadd.f32 %v1793, 1.0
      %v1853 = vadd.f32 %v1795, 1.0
      %v1854 = vadd.f32 %v1797, 1.0
      %v1855 = vadd.f32 %v1799, 1.0
      %v1856 = vadd.f32 %v1801, 1.0
      %v1857 = vadd.f32 %v1803, 1.0
      %v1858 = vadd.f32 %v1805, 1.0
      %v1859 = vadd.f32 %v1807, 1.0
      %v1860 = vadd.f32 %v1809, 1.0
      %v1861 = vadd.f32 %v1811, 1.0
      %v1862 = vadd.f32 %v1813, 1.0
      %v1863 = vadd.f32 %v1815, 1.0
      %v1864 = vadd.f32 %v1817, 1.0
      %v1865 = vadd.f32 %v1819, 1.0
      %v1866 = vadd.f32 %v1821, 1.0
      %v1867 = vadd.f32 %v1823, 1.0
      %v1868 = vadd.f32 %v1825, 1.0
      %v1869 = vadd.f32 %v1827, 1.0
      %v1870 = vadd.f32 %v1829, 1.0
      %v1871 = vadd.f32 %v1831, 1.0
      %v1872 = vadd.f32 %v1833, 1.0
      %v1873 = vadd.f32 %v1835, 1.0
      %v1874 = vadd.f32 %v1837, 1.0
      %v1875 = vadd.f32 %v1839, 1.0
      %v1876 = vadd.f32 %v1841, 1.0
      %v1877 = vadd.f32 %v1843, 1.0
      %v1878 = vadd.f32 %v1845, 1.0
      %v1879 = vadd.f32 %v1847, 1.0
      %v1880 = vrcp.pop %v1848
      %v1881 = vmul.f32 1.0, %v1880
      %v1882 = vrcp.pop %v1849
      %v1883 = vmul.f32 1.0, %v1882
      %v1884 = vrcp.pop %v1850
      %v1885 = vmul.f32 1.0, %v1884
      %v1886 = vrcp.pop %v1851
      %v1887 = vmul.f32 1.0, %v1886
      %v1888 = vrcp.pop %v1852
      %v1889 = vmul.f32 1.0, %v1888
      %v1890 = vrcp.pop %v1853
      %v1891 = vmul.f32 1.0, %v1890
      %v1892 = vrcp.pop %v1854
      %v1893 = vmul.f32 1.0, %v1892
      %v1894 = vrcp.pop %v1855
      %v1895 = vmul.f32 1.0, %v1894
      %v1896 = vrcp.pop %v1856
      %v1897 = vmul.f32 1.0, %v1896
      %v1898 = vrcp.pop %v1857
      %v1899 = vmul.f32 1.0, %v1898
      %v1900 = vrcp.pop %v1858
      %v1901 = vmul.f32 1.0, %v1900
      %v1902 = vrcp.pop %v1859
      %v1903 = vmul.f32 1.0, %v1902
      %v1904 = vrcp.pop %v1860
      %v1905 = vmul.f32 1.0, %v1904
      %v1906 = vrcp.pop %v1861
      %v1907 = vmul.f32 1.0, %v1906
      %v1908 = vrcp.pop %v1862
      %v1909 = vmul.f32 1.0, %v1908
      %v1910 = vrcp.pop %v1863
      %v1911 = vmul.f32 1.0, %v1910
      %v1912 = vrcp.pop %v1864
      %v1913 = vmul.f32 1.0, %v1912
      %v1914 = vrcp.pop %v1865
      %v1915 = vmul.f32 1.0, %v1914
      %v1916 = vrcp.pop %v1866
      %v1917 = vmul.f32 1.0, %v1916
      %v1918 = vrcp.pop %v1867
      %v1919 = vmul.f32 1.0, %v1918
      %v1920 = vrcp.pop %v1868
      %v1921 = vmul.f32 1.0, %v1920
      %v1922 = vrcp.pop %v1869
      %v1923 = vmul.f32 1.0, %v1922
      %v1924 = vrcp.pop %v1870
      %v1925 = vmul.f32 1.0, %v1924
      %v1926 = vrcp.pop %v1871
      %v1927 = vmul.f32 1.0, %v1926
      %v1928 = vrcp.pop %v1872
      %v1929 = vmul.f32 1.0, %v1928
      %v1930 = vrcp.pop %v1873
      %v1931 = vmul.f32 1.0, %v1930
      %v1932 = vrcp.pop %v1874
      %v1933 = vmul.f32 1.0, %v1932
      %v1934 = vrcp.pop %v1875
      %v1935 = vmul.f32 1.0, %v1934
      %v1936 = vrcp.pop %v1876
      %v1937 = vmul.f32 1.0, %v1936
      %v1938 = vrcp.pop %v1877
      %v1939 = vmul.f32 1.0, %v1938
      %v1940 = vrcp.pop %v1878
      %v1941 = vmul.f32 1.0, %v1940
      %v1942 = vrcp.pop %v1879
      %v1943 = vmul.f32 1.0, %v1942
      %vm1944 = vcmask 7168
      %1945 = vst.msk [vmem:[%s390] sm:$0xff] %vm1944, %v1881
      %1946 = vst.msk [vmem:[%s390 + $0x8] sm:$0xff] %vm1944, %v1883
      %1947 = vst.msk [vmem:[%s390 + $0x10] sm:$0xff] %vm1944, %v1885
      %1948 = vst.msk [vmem:[%s390 + $0x18] sm:$0xff] %vm1944, %v1887
      %1949 = vst.msk [vmem:[%s390 + $0x20] sm:$0xff] %vm1944, %v1889
      %1950 = vst.msk [vmem:[%s390 + $0x28] sm:$0xff] %vm1944, %v1891
      %1951 = vst.msk [vmem:[%s390 + $0x30] sm:$0xff] %vm1944, %v1893
      %1952 = vst.msk [vmem:[%s390 + $0x38] sm:$0xff] %vm1944, %v1895
      %1953 = vst.msk [vmem:[%s390 + $0x40] sm:$0xff] %vm1944, %v1897
      %1954 = vst.msk [vmem:[%s390 + $0x48] sm:$0xff] %vm1944, %v1899
      %1955 = vst.msk [vmem:[%s390 + $0x50] sm:$0xff] %vm1944, %v1901
      %1956 = vst.msk [vmem:[%s390 + $0x58] sm:$0xff] %vm1944, %v1903
      %1957 = vst.msk [vmem:[%s390 + $0x60] sm:$0xff] %vm1944, %v1905
      %1958 = vst.msk [vmem:[%s390 + $0x68] sm:$0xff] %vm1944, %v1907
      %1959 = vst.msk [vmem:[%s390 + $0x70] sm:$0xff] %vm1944, %v1909
      %1960 = vst.msk [vmem:[%s390 + $0x78] sm:$0xff] %vm1944, %v1911
      %1961 = vst.msk [vmem:[%s390 + $0x80] sm:$0xff] %vm1944, %v1913
      %1962 = vst.msk [vmem:[%s390 + $0x88] sm:$0xff] %vm1944, %v1915
      %1963 = vst.msk [vmem:[%s390 + $0x90] sm:$0xff] %vm1944, %v1917
      %1964 = vst.msk [vmem:[%s390 + $0x98] sm:$0xff] %vm1944, %v1919
      %1965 = vst.msk [vmem:[%s390 + $0xa0] sm:$0xff] %vm1944, %v1921
      %1966 = vst.msk [vmem:[%s390 + $0xa8] sm:$0xff] %vm1944, %v1923
      %1967 = vst.msk [vmem:[%s390 + $0xb0] sm:$0xff] %vm1944, %v1925
      %1968 = vst.msk [vmem:[%s390 + $0xb8] sm:$0xff] %vm1944, %v1927
      %1969 = vst.msk [vmem:[%s390 + $0xc0] sm:$0xff] %vm1944, %v1929
      %1970 = vst.msk [vmem:[%s390 + $0xc8] sm:$0xff] %vm1944, %v1931
      %1971 = vst.msk [vmem:[%s390 + $0xd0] sm:$0xff] %vm1944, %v1933
      %1972 = vst.msk [vmem:[%s390 + $0xd8] sm:$0xff] %vm1944, %v1935
      %1973 = vst.msk [vmem:[%s390 + $0xe0] sm:$0xff] %vm1944, %v1937
      %1974 = vst.msk [vmem:[%s390 + $0xe8] sm:$0xff] %vm1944, %v1939
      %1975 = vst.msk [vmem:[%s390 + $0xf0] sm:$0xff] %vm1944, %v1941
      %1976 = vst.msk [vmem:[%s390 + $0xf8] sm:$0xff] %vm1944, %v1943
      %s1977 = smul.u32 32, %s24
      %p1978 = scmp.lt.s32.totalorder %s1977, 63
      %s1979 = scalar_select %p1978, %s1977, 63
      %s1980 = smul.addr %s1979, 8
      %s1981 = scalar_lea.vmem %s11, %s1980
      // Predicated region
      $region65: #{tpu_custom_call.1} parent=63 // pred_check
        %p1982 = pneg %p278
      $region66: #{tpu_custom_call.1} parent=63 // pred_check_branch
        %1984 = sbr.rel (%p1982) target = $region68
      $region67: #{tpu_custom_call.1} parent=63 // pred_region
        %s1985 = smul.u32 32, %s24
      $region68: #{tpu_custom_call.1} parent=63 // pred_fallthru
        _
    $region64: #{tpu_custom_call.1} parent=5 // pred_fallthru
      _
    %p1986 = scmp.le.s32.totalorder 2, %s19
    // Predicated region
    $region69: #{tpu_custom_call.1} parent=5 // pred_check
      %p1987 = pneg %p1986
    $region70: #{tpu_custom_call.1} parent=5 // pred_check_branch
      %1989 = sbr.rel (%p1987) target = $region72
    $region71: #{tpu_custom_call.1} parent=5 // pred_region
      %s1990 = ssub.s32 %s19, 2
      // Predicated region
      $region73: #{tpu_custom_call.1} parent=71 // pred_check
        %p1991 = pneg %p284
      $region74: #{tpu_custom_call.1} parent=71 // pred_check_branch
        %1993 = sbr.rel (%p1991) target = $region76
      $region75: #{tpu_custom_call.1} parent=71 // pred_region
        %s1994 = smul.u32 32, %s25
        %p1995 = scmp.lt.s32.totalorder %s1994, 63
        %s1996 = scalar_select %p1995, %s1994, 63
        %s1997 = smul.addr %s1996, 8
        %s1998 = scalar_lea.vmem %s11, %s1997
      $region76: #{tpu_custom_call.1} parent=71 // pred_fallthru
        _
    $region72: #{tpu_custom_call.1} parent=5 // pred_fallthru
      _
  $region6: #{tpu_custom_call.1} parent=0 // loop_footer
    %s23 = sadd.s32 1, %s19
  $region7: #{tpu_custom_call.1} parent=0 // loop_footer_branch
    %18 = sbr.rel target = $region3
  $region8: #{tpu_custom_call.1} parent=0 // loop_exit
    _

</llo_original>
